<compile_context>
chip_gen: v7x
topology: tpu7x:2x2x1
jax: 0.10.0
libtpu: 0.0.40
codegen_flags: <defaults>
</compile_context>

<pallas_src>
import functools

import jax
import jax.numpy as jnp
from jax.experimental import pallas as pl
from jax.experimental.pallas import tpu as pltpu

LANE = 128        # TPU lane width; every layer width is padded to this.
TILE_ALIGN = 256  # batch-tile alignment: keeps the 256-wide MXU (v6e/v7x) fed,
                  # and is a multiple of 128 for v5e's 128-wide MXU.


# ----------------------------- activation ---------------------------------
def _apply_activation(name: str, x):
    """Mirror of torch activation_function(); traced statically per kernel."""
    if name == "relu":
        return jnp.maximum(x, 0.0)
    elif name == "selu":
        alpha = 1.6732632423543772848170429916717
        scale = 1.0507009873554804934193349852946
        return scale * jnp.where(x > 0, x, alpha * (jnp.exp(x) - 1.0))
    elif name == "elu":
        return jnp.where(x > 0, x, jnp.exp(x) - 1.0)
    elif name == "leakyrelu":
        return jnp.where(x > 0, x, 0.01 * x)
    elif name == "tanh":
        return jnp.tanh(x)
    else:  # 'linear' -> Identity
        return x


# ------------------------------- kernel ------------------------------------
def _mlp_sca_kernel(x_ref, w_ref, b_ref, out_ref, *,
                    n_gen: int, n_cls: int, g_act: str, c_act: str,
                    target_dim: int, feature_dim: int):
    """Fused Generator + SCAClassifier forward for one batch tile.

    x_ref:   [TB, target_dim] input tile (real last dim, no host lane-padding)
    w_ref:   [L, 128, 128]    zero-padded bf16 weight slab (resident in VMEM)
    b_ref:   [L, 1, 128]      zero-padded f32 bias slab    (resident in VMEM)
    out_ref: [TB, 128]        packed output: f in lanes [0:feature_dim],
                              logits in lanes [feature_dim:feature_dim+class_dim]
    """
    x = x_ref[...].astype(jnp.float32)
    tb = x.shape[0]
    if target_dim < LANE:
        # widen to 128 lanes in VMEM; padded lanes are exactly 0 and stay 0
        # through every layer (zero weight rows/cols, zero biases, act(0)==0).
        x = jnp.concatenate(
            [x, jnp.zeros((tb, LANE - target_dim), dtype=jnp.float32)], axis=-1)

    h = x
    # Generator: every Linear (including the last) is followed by activation.
    for li in range(n_gen):
        h = jnp.dot(h.astype(jnp.bfloat16), w_ref[li],
                    preferred_element_type=jnp.float32) + b_ref[li]
        h = _apply_activation(g_act, h)
    f_val = h  # f, lanes [feature_dim:] are exactly zero

    # Classifier: hidden Linears + activation, final Linear is logits only.
    for li in range(n_cls):
        h = jnp.dot(h.astype(jnp.bfloat16), w_ref[n_gen + li],
                    preferred_element_type=jnp.float32) + b_ref[n_gen + li]
        if li < n_cls - 1:
            h = _apply_activation(c_act, h)
    # h = logits, lanes [class_dim:] are exactly zero.

    # Pack f and logits into a single lane-dense output block: shift logits to
    # lanes [feature_dim:feature_dim+class_dim] (XLU roll) and add; both padded
    # regions are exactly zero so the add is an exact pack.
    out_ref[...] = (f_val + pltpu.roll(h, shift=feature_dim, axis=1)
                    ).astype(out_ref.dtype)


# ------------------------------ wrapper -------------------------------------
def _round_up(x: int, m: int) -> int:
    return (x + m - 1) // m * m


def _choose_batch_tile(B: int, max_batch_tile: int, min_grid_steps: int = 2) -> int:
    """Pick a TILE_ALIGN-aligned batch tile; keep >= min_grid_steps grid steps
    when the batch allows it so v7x can shard the 'parallel' axis over 2 TCs."""
    tb = min(_round_up(max_batch_tile, TILE_ALIGN), _round_up(B, TILE_ALIGN))
    while tb > TILE_ALIGN and (_round_up(B, tb) // tb) < min_grid_steps:
        tb = _round_up(tb // 2, TILE_ALIGN)
    return tb


def pack_params(gen_weights, gen_biases, cls_weights, cls_biases):
    """Pack all layers into one bf16 weight slab [L,128,128] and one f32 bias
    slab [L,1,128] (zero padded). Call ONCE; reuse across forward calls."""
    params = list(zip(gen_weights, gen_biases)) + list(zip(cls_weights, cls_biases))
    ws, bs = [], []
    for w, b in params:
        din, dout = w.shape
        assert din <= LANE and dout <= LANE, "layer width > 128 lanes not supported"
        ws.append(jnp.zeros((LANE, LANE), jnp.bfloat16)
                  .at[:din, :dout].set(w.astype(jnp.bfloat16)))
        bs.append(jnp.zeros((1, LANE), jnp.float32)
                  .at[0, :dout].set(b.reshape(-1).astype(jnp.float32)))
    return jnp.stack(ws), jnp.stack(bs)


@functools.partial(
    jax.jit,
    static_argnames=("n_gen", "n_cls", "g_act", "c_act",
                     "feature_dim", "class_dim", "max_batch_tile"))
def mlp_sca_forward(x, w_slab, b_slab, *, n_gen: int, n_cls: int,
                    g_act: str, c_act: str, feature_dim: int, class_dim: int,
                    max_batch_tile: int = 2048):
    """Fused MLP_SCA forward via one Pallas TPU kernel. Returns (f, pred_y).

    x:      [B, target_dim] float32
    w_slab: [L, 128, 128]   bf16, from pack_params()
    b_slab: [L, 1, 128]     f32,  from pack_params()
    """
    B, target_dim = x.shape
    L = n_gen + n_cls
    assert w_slab.shape == (L, LANE, LANE) and b_slab.shape == (L, 1, LANE)
    assert feature_dim + class_dim <= LANE, \
        "packed output needs feature_dim + class_dim <= 128"

    TB = _choose_batch_tile(B, max_batch_tile)
    B_pad = _round_up(B, TB)
    if B_pad != B:
        x = jnp.pad(x, ((0, B_pad - B), (0, 0)))  # pad batch dim only

    kernel = functools.partial(
        _mlp_sca_kernel, n_gen=n_gen, n_cls=n_cls, g_act=g_act, c_act=c_act,
        target_dim=target_dim, feature_dim=feature_dim)

    out = pl.pallas_call(
        kernel,
        grid=(B_pad // TB,),
        in_specs=[
            pl.BlockSpec((TB, target_dim), lambda i: (i, 0)),    # batch-tiled x
            pl.BlockSpec((L, LANE, LANE), lambda i: (0, 0, 0)),  # resident weights
            pl.BlockSpec((L, 1, LANE), lambda i: (0, 0, 0)),     # resident biases
        ],
        out_specs=pl.BlockSpec((TB, LANE), lambda i: (i, 0)),    # packed f|y block
        out_shape=jax.ShapeDtypeStruct((B_pad, LANE), jnp.float32),
        compiler_params=pltpu.CompilerParams(
            dimension_semantics=("parallel",)),
        # VMEM footprint (<= ~3 MiB even at TB=2048) is far below the scoped
        # default on v5e/v6e/v7x, so no vmem_limit_bytes override is needed.
    )(x, w_slab, b_slab)

    # slice packed lanes / padded batch rows back to the real dims
    f = out[:B, :feature_dim]
    pred_y = out[:B, feature_dim:feature_dim + class_dim]
    return f, pred_y


# ----------------------- deterministic parameter init -----------------------
def init_params(key, in_dim, out_dim, hp):
    """Normal(0, 0.02) weights, zero biases (matches initialize_weights())."""
    dims_in = [in_dim] + list(hp["FC_neuron"])
    dims_out = list(hp["FC_neuron"]) + [out_dim]
    weights, biases = [], []
    for din, dout in zip(dims_in, dims_out):
        key, sub = jax.random.split(key)
        # stored as [in, out] (transpose of PyTorch's [out, in]); same distribution
        weights.append(0.02 * jax.random.normal(sub, (din, dout), dtype=jnp.float32))
        biases.append(jnp.zeros((1, dout), dtype=jnp.float32))
    return key, weights, biases


# --------------------------------- main --------------------------------------
if __name__ == "__main__":
    g_hp = {"nb_FC_layer": 2, "FC_neuron": [32, 32], "activation": "tanh"}
    c_hp = {"nb_FC_layer": 2, "FC_neuron": [32, 32], "activation": "relu"}
    target_dim, feature_dim, class_dim = 16, 16, 8
    batch = 300  # TB=256 after the min-grid-steps cap -> 2 grid steps (both TCs on v7x)

    key = jax.random.PRNGKey(0)
    key, kx = jax.random.split(key)
    x = jax.random.normal(kx, (batch, target_dim), dtype=jnp.float32)

    key, gw, gb = init_params(key, target_dim, feature_dim, g_hp)
    key, cw, cb = init_params(key, feature_dim, class_dim, c_hp)

    # pack once, reuse across forward calls (hoisted out of the forward path)
    w_slab, b_slab = pack_params(gw, gb, cw, cb)

    f, pred_y = mlp_sca_forward(
        x, w_slab, b_slab,
        n_gen=len(gw), n_cls=len(cw),
        g_act=g_hp["activation"], c_act=c_hp["activation"],
        feature_dim=feature_dim, class_dim=class_dim)
    f, pred_y = jax.block_until_ready((f, pred_y))

    # pure-JAX f32 reference (same math, outside Pallas)
    h = x
    for i in range(len(gw)):
        h = _apply_activation(g_hp["activation"], h @ gw[i] + gb[i])
    f_ref = h
    for i in range(len(cw) - 1):
        h = _apply_activation(c_hp["activation"], h @ cw[i] + cb[i])
    y_ref = h @ cw[-1] + cb[-1]

    def rel_err(a, b):
        return float(jnp.max(jnp.abs(a - b)) / (jnp.max(jnp.abs(b)) + 1e-12))

    assert f.shape == (batch, feature_dim)
    assert pred_y.shape == (batch, class_dim)
    # bf16 MXU operands with f32 accumulation: expect ~1e-2 relative error.
    assert rel_err(f, f_ref) < 5e-2, f"f rel err {rel_err(f, f_ref)}"
    assert rel_err(pred_y, y_ref) < 5e-2, f"pred_y rel err {rel_err(pred_y, y_ref)}"
    # TODO(synk): training-time losses (KLDivLoss / CrossEntropyLoss) are not
    # part of forward() and are left to the host/JAX side.
    print("KERNEL_OK")
</pallas_src>

<mosaic_0001>
module attributes {stable_mosaic.version = 11 : i64} {
  func.func @_mlp_sca_kernel(%arg0: i32, %arg1: memref<256x16xf32, #tpu.memory_space<vmem>>, %arg2: memref<6x128x128xbf16, #tpu.memory_space<vmem>>, %arg3: memref<6x1x128xf32, #tpu.memory_space<vmem>>, %arg4: memref<256x128xf32, #tpu.memory_space<vmem>>) attributes {dimension_semantics = [#tpu.dimension_semantics<parallel>], iteration_bounds = array<i64: 2>, scalar_prefetch = 0 : i64, scratch_operands = 0 : i64, tpu.core_type = #tpu.core_type<tc>, window_params = [{transform_indices = @transform_0, window_bounds = array<i64: 256, 16>}, {pipeline_mode = #tpu.pipeline_mode<synchronous>, transform_indices = @transform_1, window_bounds = array<i64: 6, 128, 128>}, {pipeline_mode = #tpu.pipeline_mode<synchronous>, transform_indices = @transform_2, window_bounds = array<i64: 6, 1, 128>}, {transform_indices = @transform_3, window_bounds = array<i64: 256, 128>}]} {
    %c0 = arith.constant 0 : index
    %c0_0 = arith.constant 0 : index
    %0 = vector.load %arg1[%c0, %c0_0] : memref<256x16xf32, #tpu.memory_space<vmem>>, vector<256x16xf32>
    %cst = arith.constant 0.000000e+00 : f32
    %1 = vector.broadcast %cst : f32 to vector<256x112xf32>
    %2 = tpu.concatenate %0, %1 in 1 : vector<256x16xf32>, vector<256x112xf32> -> vector<256x128xf32>
    %3 = arith.truncf %2 : vector<256x128xf32> to vector<256x128xbf16>
    %c0_1 = arith.constant 0 : index
    %c0_2 = arith.constant 0 : index
    %c0_3 = arith.constant 0 : index
    %4 = vector.load %arg2[%c0_1, %c0_2, %c0_3] : memref<6x128x128xbf16, #tpu.memory_space<vmem>>, vector<1x128x128xbf16>
    %5 = vector.shape_cast %4 : vector<1x128x128xbf16> to vector<128x128xbf16>
    %cst_4 = arith.constant dense<0.000000e+00> : vector<256x128xf32>
    %6 = tpu.matmul %3, %5, %cst_4 {dimension_numbers = #tpu.dot_dimension_numbers<[1], [0], [0], [1], [0, 0, 1, 1], [], []>} : vector<256x128xbf16>, vector<128x128xbf16>, vector<256x128xf32> -> vector<256x128xf32>
    %c0_5 = arith.constant 0 : index
    %c0_6 = arith.constant 0 : index
    %c0_7 = arith.constant 0 : index
    %7 = vector.load %arg3[%c0_5, %c0_6, %c0_7] : memref<6x1x128xf32, #tpu.memory_space<vmem>>, vector<1x1x128xf32>
    %8 = vector.shape_cast %7 : vector<1x1x128xf32> to vector<1x128xf32>
    %9 = vector.broadcast %8 : vector<1x128xf32> to vector<256x128xf32>
    %10 = arith.addf %6, %9 : vector<256x128xf32>
    %11 = math.tanh %10 : vector<256x128xf32>
    %12 = arith.truncf %11 : vector<256x128xf32> to vector<256x128xbf16>
    %c1 = arith.constant 1 : index
    %c0_8 = arith.constant 0 : index
    %c0_9 = arith.constant 0 : index
    %13 = vector.load %arg2[%c1, %c0_8, %c0_9] : memref<6x128x128xbf16, #tpu.memory_space<vmem>>, vector<1x128x128xbf16>
    %14 = vector.shape_cast %13 : vector<1x128x128xbf16> to vector<128x128xbf16>
    %cst_10 = arith.constant dense<0.000000e+00> : vector<256x128xf32>
    %15 = tpu.matmul %12, %14, %cst_10 {dimension_numbers = #tpu.dot_dimension_numbers<[1], [0], [0], [1], [0, 0, 1, 1], [], []>} : vector<256x128xbf16>, vector<128x128xbf16>, vector<256x128xf32> -> vector<256x128xf32>
    %c1_11 = arith.constant 1 : index
    %c0_12 = arith.constant 0 : index
    %c0_13 = arith.constant 0 : index
    %16 = vector.load %arg3[%c1_11, %c0_12, %c0_13] : memref<6x1x128xf32, #tpu.memory_space<vmem>>, vector<1x1x128xf32>
    %17 = vector.shape_cast %16 : vector<1x1x128xf32> to vector<1x128xf32>
    %18 = vector.broadcast %17 : vector<1x128xf32> to vector<256x128xf32>
    %19 = arith.addf %15, %18 : vector<256x128xf32>
    %20 = math.tanh %19 : vector<256x128xf32>
    %21 = arith.truncf %20 : vector<256x128xf32> to vector<256x128xbf16>
    %c2 = arith.constant 2 : index
    %c0_14 = arith.constant 0 : index
    %c0_15 = arith.constant 0 : index
    %22 = vector.load %arg2[%c2, %c0_14, %c0_15] : memref<6x128x128xbf16, #tpu.memory_space<vmem>>, vector<1x128x128xbf16>
    %23 = vector.shape_cast %22 : vector<1x128x128xbf16> to vector<128x128xbf16>
    %cst_16 = arith.constant dense<0.000000e+00> : vector<256x128xf32>
    %24 = tpu.matmul %21, %23, %cst_16 {dimension_numbers = #tpu.dot_dimension_numbers<[1], [0], [0], [1], [0, 0, 1, 1], [], []>} : vector<256x128xbf16>, vector<128x128xbf16>, vector<256x128xf32> -> vector<256x128xf32>
    %c2_17 = arith.constant 2 : index
    %c0_18 = arith.constant 0 : index
    %c0_19 = arith.constant 0 : index
    %25 = vector.load %arg3[%c2_17, %c0_18, %c0_19] : memref<6x1x128xf32, #tpu.memory_space<vmem>>, vector<1x1x128xf32>
    %26 = vector.shape_cast %25 : vector<1x1x128xf32> to vector<1x128xf32>
    %27 = vector.broadcast %26 : vector<1x128xf32> to vector<256x128xf32>
    %28 = arith.addf %24, %27 : vector<256x128xf32>
    %29 = math.tanh %28 : vector<256x128xf32>
    %30 = arith.truncf %29 : vector<256x128xf32> to vector<256x128xbf16>
    %c3 = arith.constant 3 : index
    %c0_20 = arith.constant 0 : index
    %c0_21 = arith.constant 0 : index
    %31 = vector.load %arg2[%c3, %c0_20, %c0_21] : memref<6x128x128xbf16, #tpu.memory_space<vmem>>, vector<1x128x128xbf16>
    %32 = vector.shape_cast %31 : vector<1x128x128xbf16> to vector<128x128xbf16>
    %cst_22 = arith.constant dense<0.000000e+00> : vector<256x128xf32>
    %33 = tpu.matmul %30, %32, %cst_22 {dimension_numbers = #tpu.dot_dimension_numbers<[1], [0], [0], [1], [0, 0, 1, 1], [], []>} : vector<256x128xbf16>, vector<128x128xbf16>, vector<256x128xf32> -> vector<256x128xf32>
    %c3_23 = arith.constant 3 : index
    %c0_24 = arith.constant 0 : index
    %c0_25 = arith.constant 0 : index
    %34 = vector.load %arg3[%c3_23, %c0_24, %c0_25] : memref<6x1x128xf32, #tpu.memory_space<vmem>>, vector<1x1x128xf32>
    %35 = vector.shape_cast %34 : vector<1x1x128xf32> to vector<1x128xf32>
    %36 = vector.broadcast %35 : vector<1x128xf32> to vector<256x128xf32>
    %37 = arith.addf %33, %36 : vector<256x128xf32>
    %cst_26 = arith.constant 0.000000e+00 : f32
    %38 = vector.broadcast %cst_26 : f32 to vector<256x128xf32>
    %39 = arith.maximumf %37, %38 : vector<256x128xf32>
    %40 = arith.truncf %39 : vector<256x128xf32> to vector<256x128xbf16>
    %c4 = arith.constant 4 : index
    %c0_27 = arith.constant 0 : index
    %c0_28 = arith.constant 0 : index
    %41 = vector.load %arg2[%c4, %c0_27, %c0_28] : memref<6x128x128xbf16, #tpu.memory_space<vmem>>, vector<1x128x128xbf16>
    %42 = vector.shape_cast %41 : vector<1x128x128xbf16> to vector<128x128xbf16>
    %cst_29 = arith.constant dense<0.000000e+00> : vector<256x128xf32>
    %43 = tpu.matmul %40, %42, %cst_29 {dimension_numbers = #tpu.dot_dimension_numbers<[1], [0], [0], [1], [0, 0, 1, 1], [], []>} : vector<256x128xbf16>, vector<128x128xbf16>, vector<256x128xf32> -> vector<256x128xf32>
    %c4_30 = arith.constant 4 : index
    %c0_31 = arith.constant 0 : index
    %c0_32 = arith.constant 0 : index
    %44 = vector.load %arg3[%c4_30, %c0_31, %c0_32] : memref<6x1x128xf32, #tpu.memory_space<vmem>>, vector<1x1x128xf32>
    %45 = vector.shape_cast %44 : vector<1x1x128xf32> to vector<1x128xf32>
    %46 = vector.broadcast %45 : vector<1x128xf32> to vector<256x128xf32>
    %47 = arith.addf %43, %46 : vector<256x128xf32>
    %cst_33 = arith.constant 0.000000e+00 : f32
    %48 = vector.broadcast %cst_33 : f32 to vector<256x128xf32>
    %49 = arith.maximumf %47, %48 : vector<256x128xf32>
    %50 = arith.truncf %49 : vector<256x128xf32> to vector<256x128xbf16>
    %c5 = arith.constant 5 : index
    %c0_34 = arith.constant 0 : index
    %c0_35 = arith.constant 0 : index
    %51 = vector.load %arg2[%c5, %c0_34, %c0_35] : memref<6x128x128xbf16, #tpu.memory_space<vmem>>, vector<1x128x128xbf16>
    %52 = vector.shape_cast %51 : vector<1x128x128xbf16> to vector<128x128xbf16>
    %cst_36 = arith.constant dense<0.000000e+00> : vector<256x128xf32>
    %53 = tpu.matmul %50, %52, %cst_36 {dimension_numbers = #tpu.dot_dimension_numbers<[1], [0], [0], [1], [0, 0, 1, 1], [], []>} : vector<256x128xbf16>, vector<128x128xbf16>, vector<256x128xf32> -> vector<256x128xf32>
    %c5_37 = arith.constant 5 : index
    %c0_38 = arith.constant 0 : index
    %c0_39 = arith.constant 0 : index
    %54 = vector.load %arg3[%c5_37, %c0_38, %c0_39] : memref<6x1x128xf32, #tpu.memory_space<vmem>>, vector<1x1x128xf32>
    %55 = vector.shape_cast %54 : vector<1x1x128xf32> to vector<1x128xf32>
    %56 = vector.broadcast %55 : vector<1x128xf32> to vector<256x128xf32>
    %57 = arith.addf %53, %56 : vector<256x128xf32>
    %c16_i32 = arith.constant 16 : i32
    %58 = tpu.dynamic_rotate %57 by %c16_i32 dim 1 : vector<256x128xf32>, i32 -> vector<256x128xf32>
    %59 = arith.addf %29, %58 : vector<256x128xf32>
    %c0_40 = arith.constant 0 : index
    %c0_41 = arith.constant 0 : index
    %60 = vector.load %arg4[%c0_40, %c0_41] : memref<256x128xf32, #tpu.memory_space<vmem>>, vector<256x128xf32>
    tpu.vector_store %arg4[%c0_40, %c0_41], %59 {strides = array<i32>} : memref<256x128xf32, #tpu.memory_space<vmem>>, vector<256x128xf32>,
    return
  }
  func.func @transform_0(%arg0: i32) -> (i32, i32) {
    %c0_i32 = arith.constant 0 : i32
    %c0_i32_0 = arith.constant 0 : i32
    return %arg0, %c0_i32 : i32, i32
  }
  func.func @transform_1(%arg0: i32) -> (i32, i32, i32) {
    %c0_i32 = arith.constant 0 : i32
    %c0_i32_0 = arith.constant 0 : i32
    %c0_i32_1 = arith.constant 0 : i32
    %c0_i32_2 = arith.constant 0 : i32
    return %c0_i32, %c0_i32_0, %c0_i32_1 : i32, i32, i32
  }
  func.func @transform_2(%arg0: i32) -> (i32, i32, i32) {
    %c0_i32 = arith.constant 0 : i32
    %c0_i32_0 = arith.constant 0 : i32
    %c0_i32_1 = arith.constant 0 : i32
    %c0_i32_2 = arith.constant 0 : i32
    return %c0_i32, %c0_i32_0, %c0_i32_1 : i32, i32, i32
  }
  func.func @transform_3(%arg0: i32) -> (i32, i32) {
    %c0_i32 = arith.constant 0 : i32
    %c0_i32_0 = arith.constant 0 : i32
    return %arg0, %c0_i32 : i32, i32
  }
}

</mosaic_0001>

<llo_original>
// kernel: mlp_sca_forward.1
$region0: #{mlp_sca_forward.1}
  #allocation0 [shape = 'u32[]', space=smem, size = 0x4, offset = 0x4, fixed_abs, tag = 'smem constant byte address 0x4 - core index']
  #allocation1 [shape = 'u32[144,128]{1,0:T(1,128)}', space=vmem, size = 0x12000, scoped, tag = 'internal scratch']
  %s0 = inlined_call_operand.vmem [shape: f32[512,16], index: 0, kind: input, shape index: {}]
  %s1 = inlined_call_operand.vmem [shape: bf16[6,128,128], index: 1, kind: input, shape index: {}]
  %s2 = inlined_call_operand.vmem [shape: f32[6,1,128], index: 2, kind: input, shape index: {}]
  %s3 = inlined_call_operand.vmem [shape: f32[512,128], index: 3, kind: output, shape index: {}]
  %s4 = sld [smem:[#allocation0]]
  $region45: #{mlp_sca_forward.1} parent=0
    _
  %s6 = ssub.s32 1, %s4
  %s7 = scalar_select 0, %s6, %s4
  loop: start=0, step=1, limit=4
  $region2: #{mlp_sca_forward.1} parent=0 // loop_pre_header
    _
  $region3: #{mlp_sca_forward.1} parent=0 // loop_header
    %s9 = sphi 0, %s13
    %p10 = scmp.ge.s32.totalorder %s9, 4
    %s19 = sphi 0, %s21
    %s22 = sphi 0, %s19
    %s23 = sphi 0, %s22
    %s39 = sphi 0, %s23
    %s43 = sphi 0, %s43
    %s45 = sphi 0, %s43
    %s46 = sphi 0, %s45
    %s60 = sphi 0, %s46
    %s64 = sphi 0, %s64
    %s66 = sphi 0, %s64
    %s67 = sphi 0, %s66
    %s81 = sphi 0, %s67
    %s87 = sphi 0, %s89
    %s90 = sphi 0, %s87
    %s91 = sphi 0, %s90
    %s107 = sphi 0, %s91
  $region4: #{mlp_sca_forward.1} parent=0 // loop_header_branch
    %12 = sbr.rel (%p10) target = $region8
  $region5: #{mlp_sca_forward.1} parent=0 // loop_body
    %s14 = ssub.s32 %s9, 1
    %s15 = ssub.s32 %s9, 2
    %s16 = sadd.s32 %s9, 1
    %s17 = ssub.s32 %s9, %s16
    %p18 = scmp.eq.s32.totalorder %s17, 0
    %s20 = sadd.s32 %s19, 1
    %s21 = scalar_select %p18, %s19, %s20
    %p24 = pneg %p18
    %p25 = scmp.eq.s32.totalorder %s9, 1
    %p26 = por %p24, %p25
    %p27 = scmp.ne.s32.totalorder %s19, %s22
    %p28 = scmp.eq.s32.totalorder %s9, 0
    %p29 = por %p27, %p28
    %p30 = scmp.ne.s32.totalorder %s19, %s22
    %p31 = scmp.eq.s32.totalorder %s14, 1
    %p32 = por %p30, %p31
    %p33 = scmp.ne.s32.totalorder %s22, %s23
    %p34 = scmp.eq.s32.totalorder %s14, 0
    %p35 = por %p33, %p34
    %p36 = scmp.ne.s32.totalorder %s22, %s23
    %p37 = scmp.eq.s32.totalorder %s15, 1
    %p38 = por %p36, %p37
    %p40 = scmp.ne.s32.totalorder %s23, %s39
    %p41 = scmp.eq.s32.totalorder %s15, 0
    %p42 = por %p40, %p41
    %s44 = sadd.s32 %s43, 1
    %p47 = scmp.eq.s32.totalorder %s9, 1
    %p48 = scmp.ne.s32.totalorder %s43, %s45
    %p49 = scmp.eq.s32.totalorder %s9, 0
    %p50 = por %p48, %p49
    %p51 = scmp.ne.s32.totalorder %s43, %s45
    %p52 = scmp.eq.s32.totalorder %s14, 1
    %p53 = por %p51, %p52
    %p54 = scmp.ne.s32.totalorder %s45, %s46
    %p55 = scmp.eq.s32.totalorder %s14, 0
    %p56 = por %p54, %p55
    %p57 = scmp.ne.s32.totalorder %s45, %s46
    %p58 = scmp.eq.s32.totalorder %s15, 1
    %p59 = por %p57, %p58
    %p61 = scmp.ne.s32.totalorder %s46, %s60
    %p62 = scmp.eq.s32.totalorder %s15, 0
    %p63 = por %p61, %p62
    %s65 = sadd.s32 %s64, 1
    %p68 = scmp.eq.s32.totalorder %s9, 1
    %p69 = scmp.ne.s32.totalorder %s64, %s66
    %p70 = scmp.eq.s32.totalorder %s9, 0
    %p71 = por %p69, %p70
    %p72 = scmp.ne.s32.totalorder %s64, %s66
    %p73 = scmp.eq.s32.totalorder %s14, 1
    %p74 = por %p72, %p73
    %p75 = scmp.ne.s32.totalorder %s66, %s67
    %p76 = scmp.eq.s32.totalorder %s14, 0
    %p77 = por %p75, %p76
    %p78 = scmp.ne.s32.totalorder %s66, %s67
    %p79 = scmp.eq.s32.totalorder %s15, 1
    %p80 = por %p78, %p79
    %p82 = scmp.ne.s32.totalorder %s67, %s81
    %p83 = scmp.eq.s32.totalorder %s15, 0
    %p84 = por %p82, %p83
    %s85 = ssub.s32 %s9, %s16
    %p86 = scmp.eq.s32.totalorder %s85, 0
    %s88 = sadd.s32 %s87, 1
    %s89 = scalar_select %p86, %s87, %s88
    %p92 = pneg %p86
    %p93 = scmp.eq.s32.totalorder %s9, 1
    %p94 = por %p92, %p93
    %p95 = scmp.ne.s32.totalorder %s87, %s90
    %p96 = scmp.eq.s32.totalorder %s9, 0
    %p97 = por %p95, %p96
    %p98 = scmp.ne.s32.totalorder %s87, %s90
    %p99 = scmp.eq.s32.totalorder %s14, 1
    %p100 = por %p98, %p99
    %p101 = scmp.ne.s32.totalorder %s90, %s91
    %p102 = scmp.eq.s32.totalorder %s14, 0
    %p103 = por %p101, %p102
    %p104 = scmp.ne.s32.totalorder %s90, %s91
    %p105 = scmp.eq.s32.totalorder %s15, 1
    %p106 = por %p104, %p105
    %p108 = scmp.ne.s32.totalorder %s91, %s107
    %p109 = scmp.eq.s32.totalorder %s15, 0
    %p110 = por %p108, %p109
    %p111 = scmp.le.s32.totalorder 1, %s9
    %p112 = scmp.lt.s32.totalorder %s9, 3
    %p113 = pnand %p111, %p112
    %p114 = pneg %p113
    // Predicated region
    $region9: #{mlp_sca_forward.1} parent=5 // pred_check
      _
    $region10: #{mlp_sca_forward.1} parent=5 // pred_check_branch
      %116 = sbr.rel (%p113) target = $region12
    $region11: #{mlp_sca_forward.1} parent=5 // pred_region
      %s117 = ssub.s32 %s9, 1
      // Predicated region
      $region13: #{mlp_sca_forward.1} parent=11 // pred_check
        %p118 = pneg %p56
      $region14: #{mlp_sca_forward.1} parent=11 // pred_check_branch
        %120 = sbr.rel (%p118) target = $region16
      $region15: #{mlp_sca_forward.1} parent=11 // pred_region
        _
      $region16: #{mlp_sca_forward.1} parent=11 // pred_fallthru
        _
      // Predicated region
      $region17: #{mlp_sca_forward.1} parent=11 // pred_check
        %p121 = pneg %p77
      $region18: #{mlp_sca_forward.1} parent=11 // pred_check_branch
        %123 = sbr.rel (%p121) target = $region20
      $region19: #{mlp_sca_forward.1} parent=11 // pred_region
        _
      $region20: #{mlp_sca_forward.1} parent=11 // pred_fallthru
        _
    $region12: #{mlp_sca_forward.1} parent=5 // pred_fallthru
      _
    %p124 = scmp.lt.s32.totalorder %s9, 2
    // Predicated region
    $region21: #{mlp_sca_forward.1} parent=5 // pred_check
      %p125 = pneg %p124
    $region22: #{mlp_sca_forward.1} parent=5 // pred_check_branch
      %127 = sbr.rel (%p125) target = $region24
    $region23: #{mlp_sca_forward.1} parent=5 // pred_region
      // Predicated region
      $region25: #{mlp_sca_forward.1} parent=23 // pred_check
        %p128 = pneg %p29
      $region26: #{mlp_sca_forward.1} parent=23 // pred_check_branch
        %130 = sbr.rel (%p128) target = $region28
      $region27: #{mlp_sca_forward.1} parent=23 // pred_region
        %s131 = smul.u32 32, %s9
        %p132 = scmp.lt.s32.totalorder %s131, 63
        %s133 = scalar_select %p132, %s131, 63
        %s134 = smul.addr %s133, 8
        %s135 = scalar_lea.vmem %s0, %s134
        %s136 = smul.u32 32, %s9
      $region28: #{mlp_sca_forward.1} parent=23 // pred_fallthru
        _
    $region24: #{mlp_sca_forward.1} parent=5 // pred_fallthru
      _
    %p137 = scmp.le.s32.totalorder 1, %s9
    %p138 = scmp.lt.s32.totalorder %s9, 3
    %p139 = pnand %p137, %p138
    %p140 = pneg %p139
    // Predicated region
    $region29: #{mlp_sca_forward.1} parent=5 // pred_check
      _
    $region30: #{mlp_sca_forward.1} parent=5 // pred_check_branch
      %142 = sbr.rel (%p139) target = $region32
    $region31: #{mlp_sca_forward.1} parent=5 // pred_region
      %s143 = ssub.s32 %s9, 1
      %s144 = smul.u32 32, %s14
      %p145 = scmp.lt.s32.totalorder %s144, 63
      %s146 = scalar_select %p145, %s144, 63
      %s147 = smul.addr %s146, 8
      %s148 = scalar_lea.vmem %s0, %s147
      %p149 = pneg %p35
      %p150 = pneg %p32
      %p151 = pneg %p56
      %p152 = pneg %p53
      %p153 = pneg %p77
      %p154 = pneg %p74
      %p155 = pneg %p103
      %p156 = pneg %p100
      %s157 = smul.u32 32, %s14
      %p158 = scmp.lt.s32.totalorder %s157, 63
      %s159 = scalar_select %p158, %s157, 63
      %s160 = smul.addr %s159, 8
      %s161 = scalar_lea.vmem %s3, %s160
      %s162 = smul.u32 32, %s14
      %p163 = scmp.lt.s32.totalorder %s162, 63
      %s164 = scalar_select %p163, %s162, 63
      %s165 = smul.addr %s164, 8
      %s166 = scalar_lea.vmem %s0, %s165
      %s167 = smul.u32 32, %s14
      %s168 = smul.u32 32, %s14
      %p169 = scmp.lt.s32.totalorder %s168, 63
      %s170 = scalar_select %p169, %s168, 63
      %s171 = smul.addr %s170, 8
      %s172 = scalar_lea.vmem %s3, %s171
      %s173 = smul.u32 32, %s14
      %v175 = vld [vmem:[%s166] sm:$0xff]
      %v176 = vld [vmem:[%s166 + $0x8] sm:$0xff]
      %v177 = vld [vmem:[%s166 + $0x10] sm:$0xff]
      %v178 = vld [vmem:[%s166 + $0x18] sm:$0xff]
      %v179 = vld [vmem:[%s166 + $0x20] sm:$0xff]
      %v180 = vld [vmem:[%s166 + $0x28] sm:$0xff]
      %v181 = vld [vmem:[%s166 + $0x30] sm:$0xff]
      %v182 = vld [vmem:[%s166 + $0x38] sm:$0xff]
      %v183 = vld [vmem:[%s166 + $0x40] sm:$0xff]
      %v184 = vld [vmem:[%s166 + $0x48] sm:$0xff]
      %v185 = vld [vmem:[%s166 + $0x50] sm:$0xff]
      %v186 = vld [vmem:[%s166 + $0x58] sm:$0xff]
      %v187 = vld [vmem:[%s166 + $0x60] sm:$0xff]
      %v188 = vld [vmem:[%s166 + $0x68] sm:$0xff]
      %v189 = vld [vmem:[%s166 + $0x70] sm:$0xff]
      %v190 = vld [vmem:[%s166 + $0x78] sm:$0xff]
      %v191 = vld [vmem:[%s166 + $0x80] sm:$0xff]
      %v192 = vld [vmem:[%s166 + $0x88] sm:$0xff]
      %v193 = vld [vmem:[%s166 + $0x90] sm:$0xff]
      %v194 = vld [vmem:[%s166 + $0x98] sm:$0xff]
      %v195 = vld [vmem:[%s166 + $0xa0] sm:$0xff]
      %v196 = vld [vmem:[%s166 + $0xa8] sm:$0xff]
      %v197 = vld [vmem:[%s166 + $0xb0] sm:$0xff]
      %v198 = vld [vmem:[%s166 + $0xb8] sm:$0xff]
      %v199 = vld [vmem:[%s166 + $0xc0] sm:$0xff]
      %v200 = vld [vmem:[%s166 + $0xc8] sm:$0xff]
      %v201 = vld [vmem:[%s166 + $0xd0] sm:$0xff]
      %v202 = vld [vmem:[%s166 + $0xd8] sm:$0xff]
      %v203 = vld [vmem:[%s166 + $0xe0] sm:$0xff]
      %v204 = vld [vmem:[%s166 + $0xe8] sm:$0xff]
      %v205 = vld [vmem:[%s166 + $0xf0] sm:$0xff]
      %v206 = vld [vmem:[%s166 + $0xf8] sm:$0xff]
      %vm207 = vcmask 130048
      %v208 = vsel %vm207, %v175, 0.0
      %v209 = vsel %vm207, %v176, 0.0
      %v210 = vsel %vm207, %v177, 0.0
      %v211 = vsel %vm207, %v178, 0.0
      %v212 = vsel %vm207, %v179, 0.0
      %v213 = vsel %vm207, %v180, 0.0
      %v214 = vsel %vm207, %v181, 0.0
      %v215 = vsel %vm207, %v182, 0.0
      %v216 = vsel %vm207, %v183, 0.0
      %v217 = vsel %vm207, %v184, 0.0
      %v218 = vsel %vm207, %v185, 0.0
      %v219 = vsel %vm207, %v186, 0.0
      %v220 = vsel %vm207, %v187, 0.0
      %v221 = vsel %vm207, %v188, 0.0
      %v222 = vsel %vm207, %v189, 0.0
      %v223 = vsel %vm207, %v190, 0.0
      %v224 = vsel %vm207, %v191, 0.0
      %v225 = vsel %vm207, %v192, 0.0
      %v226 = vsel %vm207, %v193, 0.0
      %v227 = vsel %vm207, %v194, 0.0
      %v228 = vsel %vm207, %v195, 0.0
      %v229 = vsel %vm207, %v196, 0.0
      %v230 = vsel %vm207, %v197, 0.0
      %v231 = vsel %vm207, %v198, 0.0
      %v232 = vsel %vm207, %v199, 0.0
      %v233 = vsel %vm207, %v200, 0.0
      %v234 = vsel %vm207, %v201, 0.0
      %v235 = vsel %vm207, %v202, 0.0
      %v236 = vsel %vm207, %v203, 0.0
      %v237 = vsel %vm207, %v204, 0.0
      %v238 = vsel %vm207, %v205, 0.0
      %v239 = vsel %vm207, %v206, 0.0
      %v240 = vpack.c.bf16 %v209, %v208
      %v241 = vpack.c.bf16 %v211, %v210
      %v242 = vpack.c.bf16 %v213, %v212
      %v243 = vpack.c.bf16 %v215, %v214
      %v244 = vpack.c.bf16 %v217, %v216
      %v245 = vpack.c.bf16 %v219, %v218
      %v246 = vpack.c.bf16 %v221, %v220
      %v247 = vpack.c.bf16 %v223, %v222
      %v248 = vpack.c.bf16 %v225, %v224
      %v249 = vpack.c.bf16 %v227, %v226
      %v250 = vpack.c.bf16 %v229, %v228
      %v251 = vpack.c.bf16 %v231, %v230
      %v252 = vpack.c.bf16 %v233, %v232
      %v253 = vpack.c.bf16 %v235, %v234
      %v254 = vpack.c.bf16 %v237, %v236
      %v255 = vpack.c.bf16 %v239, %v238
      %v256 = vld [vmem:[%s1] sm:$0xf]
      %v257 = vld [vmem:[%s1 + $0x4] sm:$0xf]
      %v258 = vld [vmem:[%s1 + $0x8] sm:$0xf]
      %v259 = vld [vmem:[%s1 + $0xc] sm:$0xf]
      %v260 = vld [vmem:[%s1 + $0x10] sm:$0xf]
      %v261 = vld [vmem:[%s1 + $0x14] sm:$0xf]
      %v262 = vld [vmem:[%s1 + $0x18] sm:$0xf]
      %v263 = vld [vmem:[%s1 + $0x1c] sm:$0xf]
      %v264 = vld [vmem:[%s1 + $0x20] sm:$0xf]
      %v265 = vld [vmem:[%s1 + $0x24] sm:$0xf]
      %v266 = vld [vmem:[%s1 + $0x28] sm:$0xf]
      %v267 = vld [vmem:[%s1 + $0x2c] sm:$0xf]
      %v268 = vld [vmem:[%s1 + $0x30] sm:$0xf]
      %v269 = vld [vmem:[%s1 + $0x34] sm:$0xf]
      %v270 = vld [vmem:[%s1 + $0x38] sm:$0xf]
      %v271 = vld [vmem:[%s1 + $0x3c] sm:$0xf]
      %v272 = vld [vmem:[%s2] sm:$0x1]
      %v274 = vlaneseq
      %v275 = vshrl.u32 %v274, 7
      %v276 = vsub.s32 0, %v275
      %v277 = vrot.slane %v272, %v276
      %v295 = vunpack.c.l.b16 %v256
      %v296 = vunpack.c.l.b16 %v257
      %v297 = vunpack.c.l.b16 %v258
      %v298 = vunpack.c.l.b16 %v259
      %v299 = vunpack.c.l.b16 %v260
      %v300 = vunpack.c.l.b16 %v261
      %v301 = vunpack.c.l.b16 %v262
      %v302 = vunpack.c.l.b16 %v263
      %v303 = vunpack.c.l.b16 %v264
      %v304 = vunpack.c.l.b16 %v265
      %v305 = vunpack.c.l.b16 %v266
      %v306 = vunpack.c.l.b16 %v267
      %v307 = vunpack.c.l.b16 %v268
      %v308 = vunpack.c.l.b16 %v269
      %v309 = vunpack.c.l.b16 %v270
      %v310 = vunpack.c.l.b16 %v271
      %v311 = vpack.c.b16 %v296, %v295
      %v312 = vpack.c.b16 %v298, %v297
      %v313 = vpack.c.b16 %v300, %v299
      %v314 = vpack.c.b16 %v302, %v301
      %v315 = vpack.c.b16 %v304, %v303
      %v316 = vpack.c.b16 %v306, %v305
      %v317 = vpack.c.b16 %v308, %v307
      %v318 = vpack.c.b16 %v310, %v309
      %327 = vmatprep.subr.bf16.mxu0 0
      %328 = vmatpush1.bf16.msra.mxu0 %v311
      %329 = vmatprep.subr.bf16.mxu0 0
      %330 = vmatpush1.bf16.msra.mxu0 %v312
      %331 = vmatprep.subr.bf16.mxu0 0
      %332 = vmatpush1.bf16.msra.mxu0 %v313
      %333 = vmatprep.subr.bf16.mxu0 0
      %334 = vmatpush1.bf16.msra.mxu0 %v314
      %335 = vmatprep.subr.bf16.mxu0 0
      %336 = vmatpush1.bf16.msra.mxu0 %v315
      %337 = vmatprep.subr.bf16.mxu0 0
      %338 = vmatpush1.bf16.msra.mxu0 %v316
      %339 = vmatprep.subr.bf16.mxu0 0
      %340 = vmatpush1.bf16.msra.mxu0 %v317
      %341 = vmatprep.subr.bf16.mxu0 0
      %342 = vmatpush1.bf16.msra.mxu0 %v318
      %343 = vmatprep.subr.bf16.mxu0 0
      %344 = vmatpush1.bf16.msra.mxu0 0
      %345 = vmatprep.subr.bf16.mxu0 0
      %346 = vmatpush1.bf16.msra.mxu0 0
      %347 = vmatprep.subr.bf16.mxu0 0
      %348 = vmatpush1.bf16.msra.mxu0 0
      %349 = vmatprep.subr.bf16.mxu0 0
      %350 = vmatpush1.bf16.msra.mxu0 0
      %351 = vmatprep.subr.bf16.mxu0 0
      %352 = vmatpush1.bf16.msra.mxu0 0
      %353 = vmatprep.subr.bf16.mxu0 0
      %354 = vmatpush1.bf16.msra.mxu0 0
      %355 = vmatprep.subr.bf16.mxu0 0
      %356 = vmatpush1.bf16.msra.mxu0 0
      %357 = vmatprep.subr.bf16.mxu0 0
      %358 = vmatpush1.bf16.msra.mxu0 0
      %359 = vmatprep.mubr.bf16.mxu0 0
      %360 = vmatmul.mubr.bf16.gmra.mrb[0].mxu0 %v240
      %v361 = vpop.f32.mrb[0].mxu0
      %v362 = vadd.f32 %v277, %v361
      %v363 = vpop.f32.mrb[0].mxu0
      %v364 = vpop.f32.mrb[0].mxu0
      %v365 = vadd.f32 %v277, %v364
      %v366 = vpop.f32.mrb[0].mxu0
      %367 = vmatprep.mubr.bf16.mxu0 0
      %368 = vmatmul.mubr.bf16.gmra.mrb[0].mxu0 %v241
      %v369 = vpop.f32.mrb[0].mxu0
      %v370 = vadd.f32 %v277, %v369
      %v371 = vpop.f32.mrb[0].mxu0
      %v372 = vpop.f32.mrb[0].mxu0
      %v373 = vadd.f32 %v277, %v372
      %v374 = vpop.f32.mrb[0].mxu0
      %375 = vmatprep.mubr.bf16.mxu0 0
      %376 = vmatmul.mubr.bf16.gmra.mrb[0].mxu0 %v242
      %v377 = vpop.f32.mrb[0].mxu0
      %v378 = vadd.f32 %v277, %v377
      %v379 = vpop.f32.mrb[0].mxu0
      %v380 = vpop.f32.mrb[0].mxu0
      %v381 = vadd.f32 %v277, %v380
      %v382 = vpop.f32.mrb[0].mxu0
      %383 = vmatprep.mubr.bf16.mxu0 0
      %384 = vmatmul.mubr.bf16.gmra.mrb[0].mxu0 %v243
      %v385 = vpop.f32.mrb[0].mxu0
      %v386 = vadd.f32 %v277, %v385
      %v387 = vpop.f32.mrb[0].mxu0
      %v388 = vpop.f32.mrb[0].mxu0
      %v389 = vadd.f32 %v277, %v388
      %v390 = vpop.f32.mrb[0].mxu0
      %391 = vmatprep.mubr.bf16.mxu0 0
      %392 = vmatmul.mubr.bf16.gmra.mrb[0].mxu0 %v244
      %v393 = vpop.f32.mrb[0].mxu0
      %v394 = vadd.f32 %v277, %v393
      %v395 = vpop.f32.mrb[0].mxu0
      %v396 = vpop.f32.mrb[0].mxu0
      %v397 = vadd.f32 %v277, %v396
      %v398 = vpop.f32.mrb[0].mxu0
      %399 = vmatprep.mubr.bf16.mxu0 0
      %400 = vmatmul.mubr.bf16.gmra.mrb[0].mxu0 %v245
      %v401 = vpop.f32.mrb[0].mxu0
      %v402 = vadd.f32 %v277, %v401
      %v403 = vpop.f32.mrb[0].mxu0
      %v404 = vpop.f32.mrb[0].mxu0
      %v405 = vadd.f32 %v277, %v404
      %v406 = vpop.f32.mrb[0].mxu0
      %407 = vmatprep.mubr.bf16.mxu0 0
      %408 = vmatmul.mubr.bf16.gmra.mrb[0].mxu0 %v246
      %v409 = vpop.f32.mrb[0].mxu0
      %v410 = vadd.f32 %v277, %v409
      %v411 = vpop.f32.mrb[0].mxu0
      %v412 = vpop.f32.mrb[0].mxu0
      %v413 = vadd.f32 %v277, %v412
      %v414 = vpop.f32.mrb[0].mxu0
      %415 = vmatprep.mubr.bf16.mxu0 0
      %416 = vmatmul.mubr.bf16.gmra.mrb[0].mxu0 %v247
      %v417 = vpop.f32.mrb[0].mxu0
      %v418 = vadd.f32 %v277, %v417
      %v419 = vpop.f32.mrb[0].mxu0
      %v420 = vpop.f32.mrb[0].mxu0
      %v421 = vadd.f32 %v277, %v420
      %v422 = vpop.f32.mrb[0].mxu0
      %423 = vmatprep.mubr.bf16.mxu0 0
      %424 = vmatmul.mubr.bf16.gmra.mrb[0].mxu0 %v248
      %v425 = vpop.f32.mrb[0].mxu0
      %v426 = vadd.f32 %v277, %v425
      %v427 = vpop.f32.mrb[0].mxu0
      %v428 = vpop.f32.mrb[0].mxu0
      %v429 = vadd.f32 %v277, %v428
      %v430 = vpop.f32.mrb[0].mxu0
      %431 = vmatprep.mubr.bf16.mxu0 0
      %432 = vmatmul.mubr.bf16.gmra.mrb[0].mxu0 %v249
      %v433 = vpop.f32.mrb[0].mxu0
      %v434 = vadd.f32 %v277, %v433
      %v435 = vpop.f32.mrb[0].mxu0
      %v436 = vpop.f32.mrb[0].mxu0
      %v437 = vadd.f32 %v277, %v436
      %v438 = vpop.f32.mrb[0].mxu0
      %439 = vmatprep.mubr.bf16.mxu0 0
      %440 = vmatmul.mubr.bf16.gmra.mrb[0].mxu0 %v250
      %v441 = vpop.f32.mrb[0].mxu0
      %v442 = vadd.f32 %v277, %v441
      %v443 = vpop.f32.mrb[0].mxu0
      %v444 = vpop.f32.mrb[0].mxu0
      %v445 = vadd.f32 %v277, %v444
      %v446 = vpop.f32.mrb[0].mxu0
      %447 = vmatprep.mubr.bf16.mxu0 0
      %448 = vmatmul.mubr.bf16.gmra.mrb[0].mxu0 %v251
      %v449 = vpop.f32.mrb[0].mxu0
      %v450 = vadd.f32 %v277, %v449
      %v451 = vpop.f32.mrb[0].mxu0
      %v452 = vpop.f32.mrb[0].mxu0
      %v453 = vadd.f32 %v277, %v452
      %v454 = vpop.f32.mrb[0].mxu0
      %455 = vmatprep.mubr.bf16.mxu0 0
      %456 = vmatmul.mubr.bf16.gmra.mrb[0].mxu0 %v252
      %v457 = vpop.f32.mrb[0].mxu0
      %v458 = vadd.f32 %v277, %v457
      %v459 = vpop.f32.mrb[0].mxu0
      %v460 = vpop.f32.mrb[0].mxu0
      %v461 = vadd.f32 %v277, %v460
      %v462 = vpop.f32.mrb[0].mxu0
      %463 = vmatprep.mubr.bf16.mxu0 0
      %464 = vmatmul.mubr.bf16.gmra.mrb[0].mxu0 %v253
      %v465 = vpop.f32.mrb[0].mxu0
      %v466 = vadd.f32 %v277, %v465
      %v467 = vpop.f32.mrb[0].mxu0
      %v468 = vpop.f32.mrb[0].mxu0
      %v469 = vadd.f32 %v277, %v468
      %v470 = vpop.f32.mrb[0].mxu0
      %471 = vmatprep.mubr.bf16.mxu0 0
      %472 = vmatmul.mubr.bf16.gmra.mrb[0].mxu0 %v254
      %v473 = vpop.f32.mrb[0].mxu0
      %v474 = vadd.f32 %v277, %v473
      %v475 = vpop.f32.mrb[0].mxu0
      %v476 = vpop.f32.mrb[0].mxu0
      %v477 = vadd.f32 %v277, %v476
      %v478 = vpop.f32.mrb[0].mxu0
      %479 = vmatprep.mubr.bf16.mxu0 0
      %480 = vmatmul.mubr.bf16.gmra.mrb[0].mxu0 %v255
      %v481 = vpop.f32.mrb[0].mxu0
      %v482 = vadd.f32 %v277, %v481
      %v483 = vpop.f32.mrb[0].mxu0
      %v484 = vpop.f32.mrb[0].mxu0
      %v485 = vadd.f32 %v277, %v484
      %v486 = vpop.f32.mrb[0].mxu0
      %487 = vdwg.mxu0
      %v488 = vtanh.pop %v362
      %v489 = vtanh.pop %v365
      %v490 = vtanh.pop %v370
      %v491 = vtanh.pop %v373
      %v492 = vtanh.pop %v378
      %v493 = vtanh.pop %v381
      %v494 = vtanh.pop %v386
      %v495 = vtanh.pop %v389
      %v496 = vtanh.pop %v394
      %v497 = vtanh.pop %v397
      %v498 = vtanh.pop %v402
      %v499 = vtanh.pop %v405
      %v500 = vtanh.pop %v410
      %v501 = vtanh.pop %v413
      %v502 = vtanh.pop %v418
      %v503 = vtanh.pop %v421
      %v504 = vtanh.pop %v426
      %v505 = vtanh.pop %v429
      %v506 = vtanh.pop %v434
      %v507 = vtanh.pop %v437
      %v508 = vtanh.pop %v442
      %v509 = vtanh.pop %v445
      %v510 = vtanh.pop %v450
      %v511 = vtanh.pop %v453
      %v512 = vtanh.pop %v458
      %v513 = vtanh.pop %v461
      %v514 = vtanh.pop %v466
      %v515 = vtanh.pop %v469
      %v516 = vtanh.pop %v474
      %v517 = vtanh.pop %v477
      %v518 = vtanh.pop %v482
      %v519 = vtanh.pop %v485
      %v520 = vpack.c.bf16 %v489, %v488
      %v521 = vpack.c.bf16 %v491, %v490
      %v522 = vpack.c.bf16 %v493, %v492
      %v523 = vpack.c.bf16 %v495, %v494
      %v524 = vpack.c.bf16 %v497, %v496
      %v525 = vpack.c.bf16 %v499, %v498
      %v526 = vpack.c.bf16 %v501, %v500
      %v527 = vpack.c.bf16 %v503, %v502
      %v528 = vpack.c.bf16 %v505, %v504
      %v529 = vpack.c.bf16 %v507, %v506
      %v530 = vpack.c.bf16 %v509, %v508
      %v531 = vpack.c.bf16 %v511, %v510
      %v532 = vpack.c.bf16 %v513, %v512
      %v533 = vpack.c.bf16 %v515, %v514
      %v534 = vpack.c.bf16 %v517, %v516
      %v535 = vpack.c.bf16 %v519, %v518
      %s536 = scalar_lea.vmem %s1, 64
      %v537 = vld [vmem:[%s536] sm:$0xf]
      %v538 = vld [vmem:[%s536 + $0x4] sm:$0xf]
      %v539 = vld [vmem:[%s536 + $0x8] sm:$0xf]
      %v540 = vld [vmem:[%s536 + $0xc] sm:$0xf]
      %v541 = vld [vmem:[%s536 + $0x10] sm:$0xf]
      %v542 = vld [vmem:[%s536 + $0x14] sm:$0xf]
      %v543 = vld [vmem:[%s536 + $0x18] sm:$0xf]
      %v544 = vld [vmem:[%s536 + $0x1c] sm:$0xf]
      %v545 = vld [vmem:[%s536 + $0x20] sm:$0xf]
      %v546 = vld [vmem:[%s536 + $0x24] sm:$0xf]
      %v547 = vld [vmem:[%s536 + $0x28] sm:$0xf]
      %v548 = vld [vmem:[%s536 + $0x2c] sm:$0xf]
      %v549 = vld [vmem:[%s536 + $0x30] sm:$0xf]
      %v550 = vld [vmem:[%s536 + $0x34] sm:$0xf]
      %v551 = vld [vmem:[%s536 + $0x38] sm:$0xf]
      %v552 = vld [vmem:[%s536 + $0x3c] sm:$0xf]
      %s553 = scalar_lea.vmem %s2, 1
      %v554 = vld [vmem:[%s553] sm:$0x1]
      %v556 = vlaneseq
      %v557 = vshrl.u32 %v556, 7
      %v558 = vsub.s32 0, %v557
      %v559 = vrot.slane %v554, %v558
      %v577 = vunpack.c.l.b16 %v537
      %v578 = vunpack.c.l.b16 %v538
      %v579 = vunpack.c.l.b16 %v539
      %v580 = vunpack.c.l.b16 %v540
      %v581 = vunpack.c.l.b16 %v541
      %v582 = vunpack.c.l.b16 %v542
      %v583 = vunpack.c.l.b16 %v543
      %v584 = vunpack.c.l.b16 %v544
      %v585 = vunpack.c.l.b16 %v545
      %v586 = vunpack.c.l.b16 %v546
      %v587 = vunpack.c.l.b16 %v547
      %v588 = vunpack.c.l.b16 %v548
      %v589 = vunpack.c.l.b16 %v549
      %v590 = vunpack.c.l.b16 %v550
      %v591 = vunpack.c.l.b16 %v551
      %v592 = vunpack.c.l.b16 %v552
      %v593 = vpack.c.b16 %v578, %v577
      %v594 = vpack.c.b16 %v580, %v579
      %v595 = vpack.c.b16 %v582, %v581
      %v596 = vpack.c.b16 %v584, %v583
      %v597 = vpack.c.b16 %v586, %v585
      %v598 = vpack.c.b16 %v588, %v587
      %v599 = vpack.c.b16 %v590, %v589
      %v600 = vpack.c.b16 %v592, %v591
      %609 = vmatprep.subr.bf16.mxu0 0
      %610 = vmatpush1.bf16.msra.mxu0 %v593
      %611 = vmatprep.subr.bf16.mxu0 0
      %612 = vmatpush1.bf16.msra.mxu0 %v594
      %613 = vmatprep.subr.bf16.mxu0 0
      %614 = vmatpush1.bf16.msra.mxu0 %v595
      %615 = vmatprep.subr.bf16.mxu0 0
      %616 = vmatpush1.bf16.msra.mxu0 %v596
      %617 = vmatprep.subr.bf16.mxu0 0
      %618 = vmatpush1.bf16.msra.mxu0 %v597
      %619 = vmatprep.subr.bf16.mxu0 0
      %620 = vmatpush1.bf16.msra.mxu0 %v598
      %621 = vmatprep.subr.bf16.mxu0 0
      %622 = vmatpush1.bf16.msra.mxu0 %v599
      %623 = vmatprep.subr.bf16.mxu0 0
      %624 = vmatpush1.bf16.msra.mxu0 %v600
      %625 = vmatprep.subr.bf16.mxu0 0
      %626 = vmatpush1.bf16.msra.mxu0 0
      %627 = vmatprep.subr.bf16.mxu0 0
      %628 = vmatpush1.bf16.msra.mxu0 0
      %629 = vmatprep.subr.bf16.mxu0 0
      %630 = vmatpush1.bf16.msra.mxu0 0
      %631 = vmatprep.subr.bf16.mxu0 0
      %632 = vmatpush1.bf16.msra.mxu0 0
      %633 = vmatprep.subr.bf16.mxu0 0
      %634 = vmatpush1.bf16.msra.mxu0 0
      %635 = vmatprep.subr.bf16.mxu0 0
      %636 = vmatpush1.bf16.msra.mxu0 0
      %637 = vmatprep.subr.bf16.mxu0 0
      %638 = vmatpush1.bf16.msra.mxu0 0
      %639 = vmatprep.subr.bf16.mxu0 0
      %640 = vmatpush1.bf16.msra.mxu0 0
      %641 = vmatprep.mubr.bf16.mxu0 0
      %642 = vmatmul.mubr.bf16.gmra.mrb[0].mxu0 %v520
      %v643 = vpop.f32.mrb[0].mxu0
      %v644 = vadd.f32 %v559, %v643
      %v645 = vpop.f32.mrb[0].mxu0
      %v646 = vpop.f32.mrb[0].mxu0
      %v647 = vadd.f32 %v559, %v646
      %v648 = vpop.f32.mrb[0].mxu0
      %649 = vmatprep.mubr.bf16.mxu0 0
      %650 = vmatmul.mubr.bf16.gmra.mrb[0].mxu0 %v521
      %v651 = vpop.f32.mrb[0].mxu0
      %v652 = vadd.f32 %v559, %v651
      %v653 = vpop.f32.mrb[0].mxu0
      %v654 = vpop.f32.mrb[0].mxu0
      %v655 = vadd.f32 %v559, %v654
      %v656 = vpop.f32.mrb[0].mxu0
      %657 = vmatprep.mubr.bf16.mxu0 0
      %658 = vmatmul.mubr.bf16.gmra.mrb[0].mxu0 %v522
      %v659 = vpop.f32.mrb[0].mxu0
      %v660 = vadd.f32 %v559, %v659
      %v661 = vpop.f32.mrb[0].mxu0
      %v662 = vpop.f32.mrb[0].mxu0
      %v663 = vadd.f32 %v559, %v662
      %v664 = vpop.f32.mrb[0].mxu0
      %665 = vmatprep.mubr.bf16.mxu0 0
      %666 = vmatmul.mubr.bf16.gmra.mrb[0].mxu0 %v523
      %v667 = vpop.f32.mrb[0].mxu0
      %v668 = vadd.f32 %v559, %v667
      %v669 = vpop.f32.mrb[0].mxu0
      %v670 = vpop.f32.mrb[0].mxu0
      %v671 = vadd.f32 %v559, %v670
      %v672 = vpop.f32.mrb[0].mxu0
      %673 = vmatprep.mubr.bf16.mxu0 0
      %674 = vmatmul.mubr.bf16.gmra.mrb[0].mxu0 %v524
      %v675 = vpop.f32.mrb[0].mxu0
      %v676 = vadd.f32 %v559, %v675
      %v677 = vpop.f32.mrb[0].mxu0
      %v678 = vpop.f32.mrb[0].mxu0
      %v679 = vadd.f32 %v559, %v678
      %v680 = vpop.f32.mrb[0].mxu0
      %681 = vmatprep.mubr.bf16.mxu0 0
      %682 = vmatmul.mubr.bf16.gmra.mrb[0].mxu0 %v525
      %v683 = vpop.f32.mrb[0].mxu0
      %v684 = vadd.f32 %v559, %v683
      %v685 = vpop.f32.mrb[0].mxu0
      %v686 = vpop.f32.mrb[0].mxu0
      %v687 = vadd.f32 %v559, %v686
      %v688 = vpop.f32.mrb[0].mxu0
      %689 = vmatprep.mubr.bf16.mxu0 0
      %690 = vmatmul.mubr.bf16.gmra.mrb[0].mxu0 %v526
      %v691 = vpop.f32.mrb[0].mxu0
      %v692 = vadd.f32 %v559, %v691
      %v693 = vpop.f32.mrb[0].mxu0
      %v694 = vpop.f32.mrb[0].mxu0
      %v695 = vadd.f32 %v559, %v694
      %v696 = vpop.f32.mrb[0].mxu0
      %697 = vmatprep.mubr.bf16.mxu0 0
      %698 = vmatmul.mubr.bf16.gmra.mrb[0].mxu0 %v527
      %v699 = vpop.f32.mrb[0].mxu0
      %v700 = vadd.f32 %v559, %v699
      %v701 = vpop.f32.mrb[0].mxu0
      %v702 = vpop.f32.mrb[0].mxu0
      %v703 = vadd.f32 %v559, %v702
      %v704 = vpop.f32.mrb[0].mxu0
      %705 = vmatprep.mubr.bf16.mxu0 0
      %706 = vmatmul.mubr.bf16.gmra.mrb[0].mxu0 %v528
      %v707 = vpop.f32.mrb[0].mxu0
      %v708 = vadd.f32 %v559, %v707
      %v709 = vpop.f32.mrb[0].mxu0
      %v710 = vpop.f32.mrb[0].mxu0
      %v711 = vadd.f32 %v559, %v710
      %v712 = vpop.f32.mrb[0].mxu0
      %713 = vmatprep.mubr.bf16.mxu0 0
      %714 = vmatmul.mubr.bf16.gmra.mrb[0].mxu0 %v529
      %v715 = vpop.f32.mrb[0].mxu0
      %v716 = vadd.f32 %v559, %v715
      %v717 = vpop.f32.mrb[0].mxu0
      %v718 = vpop.f32.mrb[0].mxu0
      %v719 = vadd.f32 %v559, %v718
      %v720 = vpop.f32.mrb[0].mxu0
      %721 = vmatprep.mubr.bf16.mxu0 0
      %722 = vmatmul.mubr.bf16.gmra.mrb[0].mxu0 %v530
      %v723 = vpop.f32.mrb[0].mxu0
      %v724 = vadd.f32 %v559, %v723
      %v725 = vpop.f32.mrb[0].mxu0
      %v726 = vpop.f32.mrb[0].mxu0
      %v727 = vadd.f32 %v559, %v726
      %v728 = vpop.f32.mrb[0].mxu0
      %729 = vmatprep.mubr.bf16.mxu0 0
      %730 = vmatmul.mubr.bf16.gmra.mrb[0].mxu0 %v531
      %v731 = vpop.f32.mrb[0].mxu0
      %v732 = vadd.f32 %v559, %v731
      %v733 = vpop.f32.mrb[0].mxu0
      %v734 = vpop.f32.mrb[0].mxu0
      %v735 = vadd.f32 %v559, %v734
      %v736 = vpop.f32.mrb[0].mxu0
      %737 = vmatprep.mubr.bf16.mxu0 0
      %738 = vmatmul.mubr.bf16.gmra.mrb[0].mxu0 %v532
      %v739 = vpop.f32.mrb[0].mxu0
      %v740 = vadd.f32 %v559, %v739
      %v741 = vpop.f32.mrb[0].mxu0
      %v742 = vpop.f32.mrb[0].mxu0
      %v743 = vadd.f32 %v559, %v742
      %v744 = vpop.f32.mrb[0].mxu0
      %745 = vmatprep.mubr.bf16.mxu0 0
      %746 = vmatmul.mubr.bf16.gmra.mrb[0].mxu0 %v533
      %v747 = vpop.f32.mrb[0].mxu0
      %v748 = vadd.f32 %v559, %v747
      %v749 = vpop.f32.mrb[0].mxu0
      %v750 = vpop.f32.mrb[0].mxu0
      %v751 = vadd.f32 %v559, %v750
      %v752 = vpop.f32.mrb[0].mxu0
      %753 = vmatprep.mubr.bf16.mxu0 0
      %754 = vmatmul.mubr.bf16.gmra.mrb[0].mxu0 %v534
      %v755 = vpop.f32.mrb[0].mxu0
      %v756 = vadd.f32 %v559, %v755
      %v757 = vpop.f32.mrb[0].mxu0
      %v758 = vpop.f32.mrb[0].mxu0
      %v759 = vadd.f32 %v559, %v758
      %v760 = vpop.f32.mrb[0].mxu0
      %761 = vmatprep.mubr.bf16.mxu0 0
      %762 = vmatmul.mubr.bf16.gmra.mrb[0].mxu0 %v535
      %v763 = vpop.f32.mrb[0].mxu0
      %v764 = vadd.f32 %v559, %v763
      %v765 = vpop.f32.mrb[0].mxu0
      %v766 = vpop.f32.mrb[0].mxu0
      %v767 = vadd.f32 %v559, %v766
      %v768 = vpop.f32.mrb[0].mxu0
      %769 = vdwg.mxu0
      %v770 = vtanh.pop %v644
      %v771 = vtanh.pop %v647
      %v772 = vtanh.pop %v652
      %v773 = vtanh.pop %v655
      %v774 = vtanh.pop %v660
      %v775 = vtanh.pop %v663
      %v776 = vtanh.pop %v668
      %v777 = vtanh.pop %v671
      %v778 = vtanh.pop %v676
      %v779 = vtanh.pop %v679
      %v780 = vtanh.pop %v684
      %v781 = vtanh.pop %v687
      %v782 = vtanh.pop %v692
      %v783 = vtanh.pop %v695
      %v784 = vtanh.pop %v700
      %v785 = vtanh.pop %v703
      %v786 = vtanh.pop %v708
      %v787 = vtanh.pop %v711
      %v788 = vtanh.pop %v716
      %v789 = vtanh.pop %v719
      %v790 = vtanh.pop %v724
      %v791 = vtanh.pop %v727
      %v792 = vtanh.pop %v732
      %v793 = vtanh.pop %v735
      %v794 = vtanh.pop %v740
      %v795 = vtanh.pop %v743
      %v796 = vtanh.pop %v748
      %v797 = vtanh.pop %v751
      %v798 = vtanh.pop %v756
      %v799 = vtanh.pop %v759
      %v800 = vtanh.pop %v764
      %v801 = vtanh.pop %v767
      %v802 = vpack.c.bf16 %v771, %v770
      %v803 = vpack.c.bf16 %v773, %v772
      %v804 = vpack.c.bf16 %v775, %v774
      %v805 = vpack.c.bf16 %v777, %v776
      %v806 = vpack.c.bf16 %v779, %v778
      %v807 = vpack.c.bf16 %v781, %v780
      %v808 = vpack.c.bf16 %v783, %v782
      %v809 = vpack.c.bf16 %v785, %v784
      %v810 = vpack.c.bf16 %v787, %v786
      %v811 = vpack.c.bf16 %v789, %v788
      %v812 = vpack.c.bf16 %v791, %v790
      %v813 = vpack.c.bf16 %v793, %v792
      %v814 = vpack.c.bf16 %v795, %v794
      %v815 = vpack.c.bf16 %v797, %v796
      %v816 = vpack.c.bf16 %v799, %v798
      %v817 = vpack.c.bf16 %v801, %v800
      %s818 = scalar_lea.vmem %s1, 128
      %v819 = vld [vmem:[%s818] sm:$0xf]
      %v820 = vld [vmem:[%s818 + $0x4] sm:$0xf]
      %v821 = vld [vmem:[%s818 + $0x8] sm:$0xf]
      %v822 = vld [vmem:[%s818 + $0xc] sm:$0xf]
      %v823 = vld [vmem:[%s818 + $0x10] sm:$0xf]
      %v824 = vld [vmem:[%s818 + $0x14] sm:$0xf]
      %v825 = vld [vmem:[%s818 + $0x18] sm:$0xf]
      %v826 = vld [vmem:[%s818 + $0x1c] sm:$0xf]
      %v827 = vld [vmem:[%s818 + $0x20] sm:$0xf]
      %v828 = vld [vmem:[%s818 + $0x24] sm:$0xf]
      %v829 = vld [vmem:[%s818 + $0x28] sm:$0xf]
      %v830 = vld [vmem:[%s818 + $0x2c] sm:$0xf]
      %v831 = vld [vmem:[%s818 + $0x30] sm:$0xf]
      %v832 = vld [vmem:[%s818 + $0x34] sm:$0xf]
      %v833 = vld [vmem:[%s818 + $0x38] sm:$0xf]
      %v834 = vld [vmem:[%s818 + $0x3c] sm:$0xf]
      %s835 = scalar_lea.vmem %s2, 2
      %v836 = vld [vmem:[%s835] sm:$0x1]
      %v838 = vlaneseq
      %v839 = vshrl.u32 %v838, 7
      %v840 = vsub.s32 0, %v839
      %v841 = vrot.slane %v836, %v840
      %v859 = vunpack.c.l.b16 %v819
      %v860 = vunpack.c.l.b16 %v820
      %v861 = vunpack.c.l.b16 %v821
      %v862 = vunpack.c.l.b16 %v822
      %v863 = vunpack.c.l.b16 %v823
      %v864 = vunpack.c.l.b16 %v824
      %v865 = vunpack.c.l.b16 %v825
      %v866 = vunpack.c.l.b16 %v826
      %v867 = vunpack.c.l.b16 %v827
      %v868 = vunpack.c.l.b16 %v828
      %v869 = vunpack.c.l.b16 %v829
      %v870 = vunpack.c.l.b16 %v830
      %v871 = vunpack.c.l.b16 %v831
      %v872 = vunpack.c.l.b16 %v832
      %v873 = vunpack.c.l.b16 %v833
      %v874 = vunpack.c.l.b16 %v834
      %v875 = vpack.c.b16 %v860, %v859
      %v876 = vpack.c.b16 %v862, %v861
      %v877 = vpack.c.b16 %v864, %v863
      %v878 = vpack.c.b16 %v866, %v865
      %v879 = vpack.c.b16 %v868, %v867
      %v880 = vpack.c.b16 %v870, %v869
      %v881 = vpack.c.b16 %v872, %v871
      %v882 = vpack.c.b16 %v874, %v873
      %891 = vmatprep.subr.bf16.mxu0 0
      %892 = vmatpush1.bf16.msra.mxu0 %v875
      %893 = vmatprep.subr.bf16.mxu0 0
      %894 = vmatpush1.bf16.msra.mxu0 %v876
      %895 = vmatprep.subr.bf16.mxu0 0
      %896 = vmatpush1.bf16.msra.mxu0 %v877
      %897 = vmatprep.subr.bf16.mxu0 0
      %898 = vmatpush1.bf16.msra.mxu0 %v878
      %899 = vmatprep.subr.bf16.mxu0 0
      %900 = vmatpush1.bf16.msra.mxu0 %v879
      %901 = vmatprep.subr.bf16.mxu0 0
      %902 = vmatpush1.bf16.msra.mxu0 %v880
      %903 = vmatprep.subr.bf16.mxu0 0
      %904 = vmatpush1.bf16.msra.mxu0 %v881
      %905 = vmatprep.subr.bf16.mxu0 0
      %906 = vmatpush1.bf16.msra.mxu0 %v882
      %907 = vmatprep.subr.bf16.mxu0 0
      %908 = vmatpush1.bf16.msra.mxu0 0
      %909 = vmatprep.subr.bf16.mxu0 0
      %910 = vmatpush1.bf16.msra.mxu0 0
      %911 = vmatprep.subr.bf16.mxu0 0
      %912 = vmatpush1.bf16.msra.mxu0 0
      %913 = vmatprep.subr.bf16.mxu0 0
      %914 = vmatpush1.bf16.msra.mxu0 0
      %915 = vmatprep.subr.bf16.mxu0 0
      %916 = vmatpush1.bf16.msra.mxu0 0
      %917 = vmatprep.subr.bf16.mxu0 0
      %918 = vmatpush1.bf16.msra.mxu0 0
      %919 = vmatprep.subr.bf16.mxu0 0
      %920 = vmatpush1.bf16.msra.mxu0 0
      %921 = vmatprep.subr.bf16.mxu0 0
      %922 = vmatpush1.bf16.msra.mxu0 0
      %923 = vmatprep.mubr.bf16.mxu0 0
      %924 = vmatmul.mubr.bf16.gmra.mrb[0].mxu0 %v802
      %v925 = vpop.f32.mrb[0].mxu0
      %v926 = vadd.f32 %v841, %v925
      %v927 = vpop.f32.mrb[0].mxu0
      %v928 = vpop.f32.mrb[0].mxu0
      %v929 = vadd.f32 %v841, %v928
      %v930 = vpop.f32.mrb[0].mxu0
      %931 = vmatprep.mubr.bf16.mxu0 0
      %932 = vmatmul.mubr.bf16.gmra.mrb[0].mxu0 %v803
      %v933 = vpop.f32.mrb[0].mxu0
      %v934 = vadd.f32 %v841, %v933
      %v935 = vpop.f32.mrb[0].mxu0
      %v936 = vpop.f32.mrb[0].mxu0
      %v937 = vadd.f32 %v841, %v936
      %v938 = vpop.f32.mrb[0].mxu0
      %939 = vmatprep.mubr.bf16.mxu0 0
      %940 = vmatmul.mubr.bf16.gmra.mrb[0].mxu0 %v804
      %v941 = vpop.f32.mrb[0].mxu0
      %v942 = vadd.f32 %v841, %v941
      %v943 = vpop.f32.mrb[0].mxu0
      %v944 = vpop.f32.mrb[0].mxu0
      %v945 = vadd.f32 %v841, %v944
      %v946 = vpop.f32.mrb[0].mxu0
      %947 = vmatprep.mubr.bf16.mxu0 0
      %948 = vmatmul.mubr.bf16.gmra.mrb[0].mxu0 %v805
      %v949 = vpop.f32.mrb[0].mxu0
      %v950 = vadd.f32 %v841, %v949
      %v951 = vpop.f32.mrb[0].mxu0
      %v952 = vpop.f32.mrb[0].mxu0
      %v953 = vadd.f32 %v841, %v952
      %v954 = vpop.f32.mrb[0].mxu0
      %955 = vmatprep.mubr.bf16.mxu0 0
      %956 = vmatmul.mubr.bf16.gmra.mrb[0].mxu0 %v806
      %v957 = vpop.f32.mrb[0].mxu0
      %v958 = vadd.f32 %v841, %v957
      %v959 = vpop.f32.mrb[0].mxu0
      %v960 = vpop.f32.mrb[0].mxu0
      %v961 = vadd.f32 %v841, %v960
      %v962 = vpop.f32.mrb[0].mxu0
      %963 = vmatprep.mubr.bf16.mxu0 0
      %964 = vmatmul.mubr.bf16.gmra.mrb[0].mxu0 %v807
      %v965 = vpop.f32.mrb[0].mxu0
      %v966 = vadd.f32 %v841, %v965
      %v967 = vpop.f32.mrb[0].mxu0
      %v968 = vpop.f32.mrb[0].mxu0
      %v969 = vadd.f32 %v841, %v968
      %v970 = vpop.f32.mrb[0].mxu0
      %971 = vmatprep.mubr.bf16.mxu0 0
      %972 = vmatmul.mubr.bf16.gmra.mrb[0].mxu0 %v808
      %v973 = vpop.f32.mrb[0].mxu0
      %v974 = vadd.f32 %v841, %v973
      %v975 = vpop.f32.mrb[0].mxu0
      %v976 = vpop.f32.mrb[0].mxu0
      %v977 = vadd.f32 %v841, %v976
      %v978 = vpop.f32.mrb[0].mxu0
      %979 = vmatprep.mubr.bf16.mxu0 0
      %980 = vmatmul.mubr.bf16.gmra.mrb[0].mxu0 %v809
      %v981 = vpop.f32.mrb[0].mxu0
      %v982 = vadd.f32 %v841, %v981
      %v983 = vpop.f32.mrb[0].mxu0
      %v984 = vpop.f32.mrb[0].mxu0
      %v985 = vadd.f32 %v841, %v984
      %v986 = vpop.f32.mrb[0].mxu0
      %987 = vmatprep.mubr.bf16.mxu0 0
      %988 = vmatmul.mubr.bf16.gmra.mrb[0].mxu0 %v810
      %v989 = vpop.f32.mrb[0].mxu0
      %v990 = vadd.f32 %v841, %v989
      %v991 = vpop.f32.mrb[0].mxu0
      %v992 = vpop.f32.mrb[0].mxu0
      %v993 = vadd.f32 %v841, %v992
      %v994 = vpop.f32.mrb[0].mxu0
      %995 = vmatprep.mubr.bf16.mxu0 0
      %996 = vmatmul.mubr.bf16.gmra.mrb[0].mxu0 %v811
      %v997 = vpop.f32.mrb[0].mxu0
      %v998 = vadd.f32 %v841, %v997
      %v999 = vpop.f32.mrb[0].mxu0
      %v1000 = vpop.f32.mrb[0].mxu0
      %v1001 = vadd.f32 %v841, %v1000
      %v1002 = vpop.f32.mrb[0].mxu0
      %1003 = vmatprep.mubr.bf16.mxu0 0
      %1004 = vmatmul.mubr.bf16.gmra.mrb[0].mxu0 %v812
      %v1005 = vpop.f32.mrb[0].mxu0
      %v1006 = vadd.f32 %v841, %v1005
      %v1007 = vpop.f32.mrb[0].mxu0
      %v1008 = vpop.f32.mrb[0].mxu0
      %v1009 = vadd.f32 %v841, %v1008
      %v1010 = vpop.f32.mrb[0].mxu0
      %1011 = vmatprep.mubr.bf16.mxu0 0
      %1012 = vmatmul.mubr.bf16.gmra.mrb[0].mxu0 %v813
      %v1013 = vpop.f32.mrb[0].mxu0
      %v1014 = vadd.f32 %v841, %v1013
      %v1015 = vpop.f32.mrb[0].mxu0
      %v1016 = vpop.f32.mrb[0].mxu0
      %v1017 = vadd.f32 %v841, %v1016
      %v1018 = vpop.f32.mrb[0].mxu0
      %1019 = vmatprep.mubr.bf16.mxu0 0
      %1020 = vmatmul.mubr.bf16.gmra.mrb[0].mxu0 %v814
      %v1021 = vpop.f32.mrb[0].mxu0
      %v1022 = vadd.f32 %v841, %v1021
      %v1023 = vpop.f32.mrb[0].mxu0
      %v1024 = vpop.f32.mrb[0].mxu0
      %v1025 = vadd.f32 %v841, %v1024
      %v1026 = vpop.f32.mrb[0].mxu0
      %1027 = vmatprep.mubr.bf16.mxu0 0
      %1028 = vmatmul.mubr.bf16.gmra.mrb[0].mxu0 %v815
      %v1029 = vpop.f32.mrb[0].mxu0
      %v1030 = vadd.f32 %v841, %v1029
      %v1031 = vpop.f32.mrb[0].mxu0
      %v1032 = vpop.f32.mrb[0].mxu0
      %v1033 = vadd.f32 %v841, %v1032
      %v1034 = vpop.f32.mrb[0].mxu0
      %1035 = vmatprep.mubr.bf16.mxu0 0
      %1036 = vmatmul.mubr.bf16.gmra.mrb[0].mxu0 %v816
      %v1037 = vpop.f32.mrb[0].mxu0
      %v1038 = vadd.f32 %v841, %v1037
      %v1039 = vpop.f32.mrb[0].mxu0
      %v1040 = vpop.f32.mrb[0].mxu0
      %v1041 = vadd.f32 %v841, %v1040
      %v1042 = vpop.f32.mrb[0].mxu0
      %1043 = vmatprep.mubr.bf16.mxu0 0
      %1044 = vmatmul.mubr.bf16.gmra.mrb[0].mxu0 %v817
      %v1045 = vpop.f32.mrb[0].mxu0
      %v1046 = vadd.f32 %v841, %v1045
      %v1047 = vpop.f32.mrb[0].mxu0
      %v1048 = vpop.f32.mrb[0].mxu0
      %v1049 = vadd.f32 %v841, %v1048
      %v1050 = vpop.f32.mrb[0].mxu0
      %1051 = vdwg.mxu0
      %v1052 = vtanh.pop %v926
      %v1053 = vtanh.pop %v929
      %v1054 = vtanh.pop %v934
      %v1055 = vtanh.pop %v937
      %v1056 = vtanh.pop %v942
      %v1057 = vtanh.pop %v945
      %v1058 = vtanh.pop %v950
      %v1059 = vtanh.pop %v953
      %v1060 = vtanh.pop %v958
      %v1061 = vtanh.pop %v961
      %v1062 = vtanh.pop %v966
      %v1063 = vtanh.pop %v969
      %v1064 = vtanh.pop %v974
      %v1065 = vtanh.pop %v977
      %v1066 = vtanh.pop %v982
      %v1067 = vtanh.pop %v985
      %v1068 = vtanh.pop %v990
      %v1069 = vtanh.pop %v993
      %v1070 = vtanh.pop %v998
      %v1071 = vtanh.pop %v1001
      %v1072 = vtanh.pop %v1006
      %v1073 = vtanh.pop %v1009
      %v1074 = vtanh.pop %v1014
      %v1075 = vtanh.pop %v1017
      %v1076 = vtanh.pop %v1022
      %v1077 = vtanh.pop %v1025
      %v1078 = vtanh.pop %v1030
      %v1079 = vtanh.pop %v1033
      %v1080 = vtanh.pop %v1038
      %v1081 = vtanh.pop %v1041
      %v1082 = vtanh.pop %v1046
      %v1083 = vtanh.pop %v1049
      %v1084 = vpack.c.bf16 %v1053, %v1052
      %v1085 = vpack.c.bf16 %v1055, %v1054
      %v1086 = vpack.c.bf16 %v1057, %v1056
      %v1087 = vpack.c.bf16 %v1059, %v1058
      %v1088 = vpack.c.bf16 %v1061, %v1060
      %v1089 = vpack.c.bf16 %v1063, %v1062
      %v1090 = vpack.c.bf16 %v1065, %v1064
      %v1091 = vpack.c.bf16 %v1067, %v1066
      %v1092 = vpack.c.bf16 %v1069, %v1068
      %v1093 = vpack.c.bf16 %v1071, %v1070
      %v1094 = vpack.c.bf16 %v1073, %v1072
      %v1095 = vpack.c.bf16 %v1075, %v1074
      %v1096 = vpack.c.bf16 %v1077, %v1076
      %v1097 = vpack.c.bf16 %v1079, %v1078
      %v1098 = vpack.c.bf16 %v1081, %v1080
      %v1099 = vpack.c.bf16 %v1083, %v1082
      %s1100 = scalar_lea.vmem %s1, 192
      %v1101 = vld [vmem:[%s1100] sm:$0xf]
      %v1102 = vld [vmem:[%s1100 + $0x4] sm:$0xf]
      %v1103 = vld [vmem:[%s1100 + $0x8] sm:$0xf]
      %v1104 = vld [vmem:[%s1100 + $0xc] sm:$0xf]
      %v1105 = vld [vmem:[%s1100 + $0x10] sm:$0xf]
      %v1106 = vld [vmem:[%s1100 + $0x14] sm:$0xf]
      %v1107 = vld [vmem:[%s1100 + $0x18] sm:$0xf]
      %v1108 = vld [vmem:[%s1100 + $0x1c] sm:$0xf]
      %v1109 = vld [vmem:[%s1100 + $0x20] sm:$0xf]
      %v1110 = vld [vmem:[%s1100 + $0x24] sm:$0xf]
      %v1111 = vld [vmem:[%s1100 + $0x28] sm:$0xf]
      %v1112 = vld [vmem:[%s1100 + $0x2c] sm:$0xf]
      %v1113 = vld [vmem:[%s1100 + $0x30] sm:$0xf]
      %v1114 = vld [vmem:[%s1100 + $0x34] sm:$0xf]
      %v1115 = vld [vmem:[%s1100 + $0x38] sm:$0xf]
      %v1116 = vld [vmem:[%s1100 + $0x3c] sm:$0xf]
      %s1117 = scalar_lea.vmem %s2, 3
      %v1118 = vld [vmem:[%s1117] sm:$0x1]
      %v1120 = vlaneseq
      %v1121 = vshrl.u32 %v1120, 7
      %v1122 = vsub.s32 0, %v1121
      %v1123 = vrot.slane %v1118, %v1122
      %v1141 = vunpack.c.l.b16 %v1101
      %v1142 = vunpack.c.l.b16 %v1102
      %v1143 = vunpack.c.l.b16 %v1103
      %v1144 = vunpack.c.l.b16 %v1104
      %v1145 = vunpack.c.l.b16 %v1105
      %v1146 = vunpack.c.l.b16 %v1106
      %v1147 = vunpack.c.l.b16 %v1107
      %v1148 = vunpack.c.l.b16 %v1108
      %v1149 = vunpack.c.l.b16 %v1109
      %v1150 = vunpack.c.l.b16 %v1110
      %v1151 = vunpack.c.l.b16 %v1111
      %v1152 = vunpack.c.l.b16 %v1112
      %v1153 = vunpack.c.l.b16 %v1113
      %v1154 = vunpack.c.l.b16 %v1114
      %v1155 = vunpack.c.l.b16 %v1115
      %v1156 = vunpack.c.l.b16 %v1116
      %v1157 = vpack.c.b16 %v1142, %v1141
      %v1158 = vpack.c.b16 %v1144, %v1143
      %v1159 = vpack.c.b16 %v1146, %v1145
      %v1160 = vpack.c.b16 %v1148, %v1147
      %v1161 = vpack.c.b16 %v1150, %v1149
      %v1162 = vpack.c.b16 %v1152, %v1151
      %v1163 = vpack.c.b16 %v1154, %v1153
      %v1164 = vpack.c.b16 %v1156, %v1155
      %1173 = vmatprep.subr.bf16.mxu0 0
      %1174 = vmatpush1.bf16.msra.mxu0 %v1157
      %1175 = vmatprep.subr.bf16.mxu0 0
      %1176 = vmatpush1.bf16.msra.mxu0 %v1158
      %1177 = vmatprep.subr.bf16.mxu0 0
      %1178 = vmatpush1.bf16.msra.mxu0 %v1159
      %1179 = vmatprep.subr.bf16.mxu0 0
      %1180 = vmatpush1.bf16.msra.mxu0 %v1160
      %1181 = vmatprep.subr.bf16.mxu0 0
      %1182 = vmatpush1.bf16.msra.mxu0 %v1161
      %1183 = vmatprep.subr.bf16.mxu0 0
      %1184 = vmatpush1.bf16.msra.mxu0 %v1162
      %1185 = vmatprep.subr.bf16.mxu0 0
      %1186 = vmatpush1.bf16.msra.mxu0 %v1163
      %1187 = vmatprep.subr.bf16.mxu0 0
      %1188 = vmatpush1.bf16.msra.mxu0 %v1164
      %1189 = vmatprep.subr.bf16.mxu0 0
      %1190 = vmatpush1.bf16.msra.mxu0 0
      %1191 = vmatprep.subr.bf16.mxu0 0
      %1192 = vmatpush1.bf16.msra.mxu0 0
      %1193 = vmatprep.subr.bf16.mxu0 0
      %1194 = vmatpush1.bf16.msra.mxu0 0
      %1195 = vmatprep.subr.bf16.mxu0 0
      %1196 = vmatpush1.bf16.msra.mxu0 0
      %1197 = vmatprep.subr.bf16.mxu0 0
      %1198 = vmatpush1.bf16.msra.mxu0 0
      %1199 = vmatprep.subr.bf16.mxu0 0
      %1200 = vmatpush1.bf16.msra.mxu0 0
      %1201 = vmatprep.subr.bf16.mxu0 0
      %1202 = vmatpush1.bf16.msra.mxu0 0
      %1203 = vmatprep.subr.bf16.mxu0 0
      %1204 = vmatpush1.bf16.msra.mxu0 0
      %1205 = vmatprep.mubr.bf16.mxu0 0
      %1206 = vmatmul.mubr.bf16.gmra.mrb[0].mxu0 %v1084
      %v1207 = vpop.f32.mrb[0].mxu0
      %v1208 = vadd.f32 %v1123, %v1207
      %v1209 = vpop.f32.mrb[0].mxu0
      %v1210 = vpop.f32.mrb[0].mxu0
      %v1211 = vadd.f32 %v1123, %v1210
      %v1212 = vpop.f32.mrb[0].mxu0
      %1213 = vmatprep.mubr.bf16.mxu0 0
      %1214 = vmatmul.mubr.bf16.gmra.mrb[0].mxu0 %v1085
      %v1215 = vpop.f32.mrb[0].mxu0
      %v1216 = vadd.f32 %v1123, %v1215
      %v1217 = vpop.f32.mrb[0].mxu0
      %v1218 = vpop.f32.mrb[0].mxu0
      %v1219 = vadd.f32 %v1123, %v1218
      %v1220 = vpop.f32.mrb[0].mxu0
      %1221 = vmatprep.mubr.bf16.mxu0 0
      %1222 = vmatmul.mubr.bf16.gmra.mrb[0].mxu0 %v1086
      %v1223 = vpop.f32.mrb[0].mxu0
      %v1224 = vadd.f32 %v1123, %v1223
      %v1225 = vpop.f32.mrb[0].mxu0
      %v1226 = vpop.f32.mrb[0].mxu0
      %v1227 = vadd.f32 %v1123, %v1226
      %v1228 = vpop.f32.mrb[0].mxu0
      %1229 = vmatprep.mubr.bf16.mxu0 0
      %1230 = vmatmul.mubr.bf16.gmra.mrb[0].mxu0 %v1087
      %v1231 = vpop.f32.mrb[0].mxu0
      %v1232 = vadd.f32 %v1123, %v1231
      %v1233 = vpop.f32.mrb[0].mxu0
      %v1234 = vpop.f32.mrb[0].mxu0
      %v1235 = vadd.f32 %v1123, %v1234
      %v1236 = vpop.f32.mrb[0].mxu0
      %1237 = vmatprep.mubr.bf16.mxu0 0
      %1238 = vmatmul.mubr.bf16.gmra.mrb[0].mxu0 %v1088
      %v1239 = vpop.f32.mrb[0].mxu0
      %v1240 = vadd.f32 %v1123, %v1239
      %v1241 = vpop.f32.mrb[0].mxu0
      %v1242 = vpop.f32.mrb[0].mxu0
      %v1243 = vadd.f32 %v1123, %v1242
      %v1244 = vpop.f32.mrb[0].mxu0
      %1245 = vmatprep.mubr.bf16.mxu0 0
      %1246 = vmatmul.mubr.bf16.gmra.mrb[0].mxu0 %v1089
      %v1247 = vpop.f32.mrb[0].mxu0
      %v1248 = vadd.f32 %v1123, %v1247
      %v1249 = vpop.f32.mrb[0].mxu0
      %v1250 = vpop.f32.mrb[0].mxu0
      %v1251 = vadd.f32 %v1123, %v1250
      %v1252 = vpop.f32.mrb[0].mxu0
      %1253 = vmatprep.mubr.bf16.mxu0 0
      %1254 = vmatmul.mubr.bf16.gmra.mrb[0].mxu0 %v1090
      %v1255 = vpop.f32.mrb[0].mxu0
      %v1256 = vadd.f32 %v1123, %v1255
      %v1257 = vpop.f32.mrb[0].mxu0
      %v1258 = vpop.f32.mrb[0].mxu0
      %v1259 = vadd.f32 %v1123, %v1258
      %v1260 = vpop.f32.mrb[0].mxu0
      %1261 = vmatprep.mubr.bf16.mxu0 0
      %1262 = vmatmul.mubr.bf16.gmra.mrb[0].mxu0 %v1091
      %v1263 = vpop.f32.mrb[0].mxu0
      %v1264 = vadd.f32 %v1123, %v1263
      %v1265 = vpop.f32.mrb[0].mxu0
      %v1266 = vpop.f32.mrb[0].mxu0
      %v1267 = vadd.f32 %v1123, %v1266
      %v1268 = vpop.f32.mrb[0].mxu0
      %1269 = vmatprep.mubr.bf16.mxu0 0
      %1270 = vmatmul.mubr.bf16.gmra.mrb[0].mxu0 %v1092
      %v1271 = vpop.f32.mrb[0].mxu0
      %v1272 = vadd.f32 %v1123, %v1271
      %v1273 = vpop.f32.mrb[0].mxu0
      %v1274 = vpop.f32.mrb[0].mxu0
      %v1275 = vadd.f32 %v1123, %v1274
      %v1276 = vpop.f32.mrb[0].mxu0
      %1277 = vmatprep.mubr.bf16.mxu0 0
      %1278 = vmatmul.mubr.bf16.gmra.mrb[0].mxu0 %v1093
      %v1279 = vpop.f32.mrb[0].mxu0
      %v1280 = vadd.f32 %v1123, %v1279
      %v1281 = vpop.f32.mrb[0].mxu0
      %v1282 = vpop.f32.mrb[0].mxu0
      %v1283 = vadd.f32 %v1123, %v1282
      %v1284 = vpop.f32.mrb[0].mxu0
      %1285 = vmatprep.mubr.bf16.mxu0 0
      %1286 = vmatmul.mubr.bf16.gmra.mrb[0].mxu0 %v1094
      %v1287 = vpop.f32.mrb[0].mxu0
      %v1288 = vadd.f32 %v1123, %v1287
      %v1289 = vpop.f32.mrb[0].mxu0
      %v1290 = vpop.f32.mrb[0].mxu0
      %v1291 = vadd.f32 %v1123, %v1290
      %v1292 = vpop.f32.mrb[0].mxu0
      %1293 = vmatprep.mubr.bf16.mxu0 0
      %1294 = vmatmul.mubr.bf16.gmra.mrb[0].mxu0 %v1095
      %v1295 = vpop.f32.mrb[0].mxu0
      %v1296 = vadd.f32 %v1123, %v1295
      %v1297 = vpop.f32.mrb[0].mxu0
      %v1298 = vpop.f32.mrb[0].mxu0
      %v1299 = vadd.f32 %v1123, %v1298
      %v1300 = vpop.f32.mrb[0].mxu0
      %1301 = vmatprep.mubr.bf16.mxu0 0
      %1302 = vmatmul.mubr.bf16.gmra.mrb[0].mxu0 %v1096
      %v1303 = vpop.f32.mrb[0].mxu0
      %v1304 = vadd.f32 %v1123, %v1303
      %v1305 = vpop.f32.mrb[0].mxu0
      %v1306 = vpop.f32.mrb[0].mxu0
      %v1307 = vadd.f32 %v1123, %v1306
      %v1308 = vpop.f32.mrb[0].mxu0
      %1309 = vmatprep.mubr.bf16.mxu0 0
      %1310 = vmatmul.mubr.bf16.gmra.mrb[0].mxu0 %v1097
      %v1311 = vpop.f32.mrb[0].mxu0
      %v1312 = vadd.f32 %v1123, %v1311
      %v1313 = vpop.f32.mrb[0].mxu0
      %v1314 = vpop.f32.mrb[0].mxu0
      %v1315 = vadd.f32 %v1123, %v1314
      %v1316 = vpop.f32.mrb[0].mxu0
      %1317 = vmatprep.mubr.bf16.mxu0 0
      %1318 = vmatmul.mubr.bf16.gmra.mrb[0].mxu0 %v1098
      %v1319 = vpop.f32.mrb[0].mxu0
      %v1320 = vadd.f32 %v1123, %v1319
      %v1321 = vpop.f32.mrb[0].mxu0
      %v1322 = vpop.f32.mrb[0].mxu0
      %v1323 = vadd.f32 %v1123, %v1322
      %v1324 = vpop.f32.mrb[0].mxu0
      %1325 = vmatprep.mubr.bf16.mxu0 0
      %1326 = vmatmul.mubr.bf16.gmra.mrb[0].mxu0 %v1099
      %v1327 = vpop.f32.mrb[0].mxu0
      %v1328 = vadd.f32 %v1123, %v1327
      %v1329 = vpop.f32.mrb[0].mxu0
      %v1330 = vpop.f32.mrb[0].mxu0
      %v1331 = vadd.f32 %v1123, %v1330
      %v1332 = vpop.f32.mrb[0].mxu0
      %1333 = vdwg.mxu0
      %v1334 = vmax.f32 %v1208, 0.0
      %v1335 = vmax.f32 %v1211, 0.0
      %v1336 = vmax.f32 %v1216, 0.0
      %v1337 = vmax.f32 %v1219, 0.0
      %v1338 = vmax.f32 %v1224, 0.0
      %v1339 = vmax.f32 %v1227, 0.0
      %v1340 = vmax.f32 %v1232, 0.0
      %v1341 = vmax.f32 %v1235, 0.0
      %v1342 = vmax.f32 %v1240, 0.0
      %v1343 = vmax.f32 %v1243, 0.0
      %v1344 = vmax.f32 %v1248, 0.0
      %v1345 = vmax.f32 %v1251, 0.0
      %v1346 = vmax.f32 %v1256, 0.0
      %v1347 = vmax.f32 %v1259, 0.0
      %v1348 = vmax.f32 %v1264, 0.0
      %v1349 = vmax.f32 %v1267, 0.0
      %v1350 = vmax.f32 %v1272, 0.0
      %v1351 = vmax.f32 %v1275, 0.0
      %v1352 = vmax.f32 %v1280, 0.0
      %v1353 = vmax.f32 %v1283, 0.0
      %v1354 = vmax.f32 %v1288, 0.0
      %v1355 = vmax.f32 %v1291, 0.0
      %v1356 = vmax.f32 %v1296, 0.0
      %v1357 = vmax.f32 %v1299, 0.0
      %v1358 = vmax.f32 %v1304, 0.0
      %v1359 = vmax.f32 %v1307, 0.0
      %v1360 = vmax.f32 %v1312, 0.0
      %v1361 = vmax.f32 %v1315, 0.0
      %v1362 = vmax.f32 %v1320, 0.0
      %v1363 = vmax.f32 %v1323, 0.0
      %v1364 = vmax.f32 %v1328, 0.0
      %v1365 = vmax.f32 %v1331, 0.0
      %v1366 = vpack.c.bf16 %v1335, %v1334
      %v1367 = vpack.c.bf16 %v1337, %v1336
      %v1368 = vpack.c.bf16 %v1339, %v1338
      %v1369 = vpack.c.bf16 %v1341, %v1340
      %v1370 = vpack.c.bf16 %v1343, %v1342
      %v1371 = vpack.c.bf16 %v1345, %v1344
      %v1372 = vpack.c.bf16 %v1347, %v1346
      %v1373 = vpack.c.bf16 %v1349, %v1348
      %v1374 = vpack.c.bf16 %v1351, %v1350
      %v1375 = vpack.c.bf16 %v1353, %v1352
      %v1376 = vpack.c.bf16 %v1355, %v1354
      %v1377 = vpack.c.bf16 %v1357, %v1356
      %v1378 = vpack.c.bf16 %v1359, %v1358
      %v1379 = vpack.c.bf16 %v1361, %v1360
      %v1380 = vpack.c.bf16 %v1363, %v1362
      %v1381 = vpack.c.bf16 %v1365, %v1364
      %s1382 = scalar_lea.vmem %s1, 256
      %v1383 = vld [vmem:[%s1382] sm:$0xf]
      %v1384 = vld [vmem:[%s1382 + $0x4] sm:$0xf]
      %v1385 = vld [vmem:[%s1382 + $0x8] sm:$0xf]
      %v1386 = vld [vmem:[%s1382 + $0xc] sm:$0xf]
      %v1387 = vld [vmem:[%s1382 + $0x10] sm:$0xf]
      %v1388 = vld [vmem:[%s1382 + $0x14] sm:$0xf]
      %v1389 = vld [vmem:[%s1382 + $0x18] sm:$0xf]
      %v1390 = vld [vmem:[%s1382 + $0x1c] sm:$0xf]
      %v1391 = vld [vmem:[%s1382 + $0x20] sm:$0xf]
      %v1392 = vld [vmem:[%s1382 + $0x24] sm:$0xf]
      %v1393 = vld [vmem:[%s1382 + $0x28] sm:$0xf]
      %v1394 = vld [vmem:[%s1382 + $0x2c] sm:$0xf]
      %v1395 = vld [vmem:[%s1382 + $0x30] sm:$0xf]
      %v1396 = vld [vmem:[%s1382 + $0x34] sm:$0xf]
      %v1397 = vld [vmem:[%s1382 + $0x38] sm:$0xf]
      %v1398 = vld [vmem:[%s1382 + $0x3c] sm:$0xf]
      %s1399 = scalar_lea.vmem %s2, 4
      %v1400 = vld [vmem:[%s1399] sm:$0x1]
      %v1402 = vlaneseq
      %v1403 = vshrl.u32 %v1402, 7
      %v1404 = vsub.s32 0, %v1403
      %v1405 = vrot.slane %v1400, %v1404
      %v1423 = vunpack.c.l.b16 %v1383
      %v1424 = vunpack.c.l.b16 %v1384
      %v1425 = vunpack.c.l.b16 %v1385
      %v1426 = vunpack.c.l.b16 %v1386
      %v1427 = vunpack.c.l.b16 %v1387
      %v1428 = vunpack.c.l.b16 %v1388
      %v1429 = vunpack.c.l.b16 %v1389
      %v1430 = vunpack.c.l.b16 %v1390
      %v1431 = vunpack.c.l.b16 %v1391
      %v1432 = vunpack.c.l.b16 %v1392
      %v1433 = vunpack.c.l.b16 %v1393
      %v1434 = vunpack.c.l.b16 %v1394
      %v1435 = vunpack.c.l.b16 %v1395
      %v1436 = vunpack.c.l.b16 %v1396
      %v1437 = vunpack.c.l.b16 %v1397
      %v1438 = vunpack.c.l.b16 %v1398
      %v1439 = vpack.c.b16 %v1424, %v1423
      %v1440 = vpack.c.b16 %v1426, %v1425
      %v1441 = vpack.c.b16 %v1428, %v1427
      %v1442 = vpack.c.b16 %v1430, %v1429
      %v1443 = vpack.c.b16 %v1432, %v1431
      %v1444 = vpack.c.b16 %v1434, %v1433
      %v1445 = vpack.c.b16 %v1436, %v1435
      %v1446 = vpack.c.b16 %v1438, %v1437
      %1455 = vmatprep.subr.bf16.mxu0 0
      %1456 = vmatpush1.bf16.msra.mxu0 %v1439
      %1457 = vmatprep.subr.bf16.mxu0 0
      %1458 = vmatpush1.bf16.msra.mxu0 %v1440
      %1459 = vmatprep.subr.bf16.mxu0 0
      %1460 = vmatpush1.bf16.msra.mxu0 %v1441
      %1461 = vmatprep.subr.bf16.mxu0 0
      %1462 = vmatpush1.bf16.msra.mxu0 %v1442
      %1463 = vmatprep.subr.bf16.mxu0 0
      %1464 = vmatpush1.bf16.msra.mxu0 %v1443
      %1465 = vmatprep.subr.bf16.mxu0 0
      %1466 = vmatpush1.bf16.msra.mxu0 %v1444
      %1467 = vmatprep.subr.bf16.mxu0 0
      %1468 = vmatpush1.bf16.msra.mxu0 %v1445
      %1469 = vmatprep.subr.bf16.mxu0 0
      %1470 = vmatpush1.bf16.msra.mxu0 %v1446
      %1471 = vmatprep.subr.bf16.mxu0 0
      %1472 = vmatpush1.bf16.msra.mxu0 0
      %1473 = vmatprep.subr.bf16.mxu0 0
      %1474 = vmatpush1.bf16.msra.mxu0 0
      %1475 = vmatprep.subr.bf16.mxu0 0
      %1476 = vmatpush1.bf16.msra.mxu0 0
      %1477 = vmatprep.subr.bf16.mxu0 0
      %1478 = vmatpush1.bf16.msra.mxu0 0
      %1479 = vmatprep.subr.bf16.mxu0 0
      %1480 = vmatpush1.bf16.msra.mxu0 0
      %1481 = vmatprep.subr.bf16.mxu0 0
      %1482 = vmatpush1.bf16.msra.mxu0 0
      %1483 = vmatprep.subr.bf16.mxu0 0
      %1484 = vmatpush1.bf16.msra.mxu0 0
      %1485 = vmatprep.subr.bf16.mxu0 0
      %1486 = vmatpush1.bf16.msra.mxu0 0
      %1487 = vmatprep.mubr.bf16.mxu0 0
      %1488 = vmatmul.mubr.bf16.gmra.mrb[0].mxu0 %v1366
      %v1489 = vpop.f32.mrb[0].mxu0
      %v1490 = vadd.f32 %v1405, %v1489
      %v1491 = vpop.f32.mrb[0].mxu0
      %v1492 = vpop.f32.mrb[0].mxu0
      %v1493 = vadd.f32 %v1405, %v1492
      %v1494 = vpop.f32.mrb[0].mxu0
      %1495 = vmatprep.mubr.bf16.mxu0 0
      %1496 = vmatmul.mubr.bf16.gmra.mrb[0].mxu0 %v1367
      %v1497 = vpop.f32.mrb[0].mxu0
      %v1498 = vadd.f32 %v1405, %v1497
      %v1499 = vpop.f32.mrb[0].mxu0
      %v1500 = vpop.f32.mrb[0].mxu0
      %v1501 = vadd.f32 %v1405, %v1500
      %v1502 = vpop.f32.mrb[0].mxu0
      %1503 = vmatprep.mubr.bf16.mxu0 0
      %1504 = vmatmul.mubr.bf16.gmra.mrb[0].mxu0 %v1368
      %v1505 = vpop.f32.mrb[0].mxu0
      %v1506 = vadd.f32 %v1405, %v1505
      %v1507 = vpop.f32.mrb[0].mxu0
      %v1508 = vpop.f32.mrb[0].mxu0
      %v1509 = vadd.f32 %v1405, %v1508
      %v1510 = vpop.f32.mrb[0].mxu0
      %1511 = vmatprep.mubr.bf16.mxu0 0
      %1512 = vmatmul.mubr.bf16.gmra.mrb[0].mxu0 %v1369
      %v1513 = vpop.f32.mrb[0].mxu0
      %v1514 = vadd.f32 %v1405, %v1513
      %v1515 = vpop.f32.mrb[0].mxu0
      %v1516 = vpop.f32.mrb[0].mxu0
      %v1517 = vadd.f32 %v1405, %v1516
      %v1518 = vpop.f32.mrb[0].mxu0
      %1519 = vmatprep.mubr.bf16.mxu0 0
      %1520 = vmatmul.mubr.bf16.gmra.mrb[0].mxu0 %v1370
      %v1521 = vpop.f32.mrb[0].mxu0
      %v1522 = vadd.f32 %v1405, %v1521
      %v1523 = vpop.f32.mrb[0].mxu0
      %v1524 = vpop.f32.mrb[0].mxu0
      %v1525 = vadd.f32 %v1405, %v1524
      %v1526 = vpop.f32.mrb[0].mxu0
      %1527 = vmatprep.mubr.bf16.mxu0 0
      %1528 = vmatmul.mubr.bf16.gmra.mrb[0].mxu0 %v1371
      %v1529 = vpop.f32.mrb[0].mxu0
      %v1530 = vadd.f32 %v1405, %v1529
      %v1531 = vpop.f32.mrb[0].mxu0
      %v1532 = vpop.f32.mrb[0].mxu0
      %v1533 = vadd.f32 %v1405, %v1532
      %v1534 = vpop.f32.mrb[0].mxu0
      %1535 = vmatprep.mubr.bf16.mxu0 0
      %1536 = vmatmul.mubr.bf16.gmra.mrb[0].mxu0 %v1372
      %v1537 = vpop.f32.mrb[0].mxu0
      %v1538 = vadd.f32 %v1405, %v1537
      %v1539 = vpop.f32.mrb[0].mxu0
      %v1540 = vpop.f32.mrb[0].mxu0
      %v1541 = vadd.f32 %v1405, %v1540
      %v1542 = vpop.f32.mrb[0].mxu0
      %1543 = vmatprep.mubr.bf16.mxu0 0
      %1544 = vmatmul.mubr.bf16.gmra.mrb[0].mxu0 %v1373
      %v1545 = vpop.f32.mrb[0].mxu0
      %v1546 = vadd.f32 %v1405, %v1545
      %v1547 = vpop.f32.mrb[0].mxu0
      %v1548 = vpop.f32.mrb[0].mxu0
      %v1549 = vadd.f32 %v1405, %v1548
      %v1550 = vpop.f32.mrb[0].mxu0
      %1551 = vmatprep.mubr.bf16.mxu0 0
      %1552 = vmatmul.mubr.bf16.gmra.mrb[0].mxu0 %v1374
      %v1553 = vpop.f32.mrb[0].mxu0
      %v1554 = vadd.f32 %v1405, %v1553
      %v1555 = vpop.f32.mrb[0].mxu0
      %v1556 = vpop.f32.mrb[0].mxu0
      %v1557 = vadd.f32 %v1405, %v1556
      %v1558 = vpop.f32.mrb[0].mxu0
      %1559 = vmatprep.mubr.bf16.mxu0 0
      %1560 = vmatmul.mubr.bf16.gmra.mrb[0].mxu0 %v1375
      %v1561 = vpop.f32.mrb[0].mxu0
      %v1562 = vadd.f32 %v1405, %v1561
      %v1563 = vpop.f32.mrb[0].mxu0
      %v1564 = vpop.f32.mrb[0].mxu0
      %v1565 = vadd.f32 %v1405, %v1564
      %v1566 = vpop.f32.mrb[0].mxu0
      %1567 = vmatprep.mubr.bf16.mxu0 0
      %1568 = vmatmul.mubr.bf16.gmra.mrb[0].mxu0 %v1376
      %v1569 = vpop.f32.mrb[0].mxu0
      %v1570 = vadd.f32 %v1405, %v1569
      %v1571 = vpop.f32.mrb[0].mxu0
      %v1572 = vpop.f32.mrb[0].mxu0
      %v1573 = vadd.f32 %v1405, %v1572
      %v1574 = vpop.f32.mrb[0].mxu0
      %1575 = vmatprep.mubr.bf16.mxu0 0
      %1576 = vmatmul.mubr.bf16.gmra.mrb[0].mxu0 %v1377
      %v1577 = vpop.f32.mrb[0].mxu0
      %v1578 = vadd.f32 %v1405, %v1577
      %v1579 = vpop.f32.mrb[0].mxu0
      %v1580 = vpop.f32.mrb[0].mxu0
      %v1581 = vadd.f32 %v1405, %v1580
      %v1582 = vpop.f32.mrb[0].mxu0
      %1583 = vmatprep.mubr.bf16.mxu0 0
      %1584 = vmatmul.mubr.bf16.gmra.mrb[0].mxu0 %v1378
      %v1585 = vpop.f32.mrb[0].mxu0
      %v1586 = vadd.f32 %v1405, %v1585
      %v1587 = vpop.f32.mrb[0].mxu0
      %v1588 = vpop.f32.mrb[0].mxu0
      %v1589 = vadd.f32 %v1405, %v1588
      %v1590 = vpop.f32.mrb[0].mxu0
      %1591 = vmatprep.mubr.bf16.mxu0 0
      %1592 = vmatmul.mubr.bf16.gmra.mrb[0].mxu0 %v1379
      %v1593 = vpop.f32.mrb[0].mxu0
      %v1594 = vadd.f32 %v1405, %v1593
      %v1595 = vpop.f32.mrb[0].mxu0
      %v1596 = vpop.f32.mrb[0].mxu0
      %v1597 = vadd.f32 %v1405, %v1596
      %v1598 = vpop.f32.mrb[0].mxu0
      %1599 = vmatprep.mubr.bf16.mxu0 0
      %1600 = vmatmul.mubr.bf16.gmra.mrb[0].mxu0 %v1380
      %v1601 = vpop.f32.mrb[0].mxu0
      %v1602 = vadd.f32 %v1405, %v1601
      %v1603 = vpop.f32.mrb[0].mxu0
      %v1604 = vpop.f32.mrb[0].mxu0
      %v1605 = vadd.f32 %v1405, %v1604
      %v1606 = vpop.f32.mrb[0].mxu0
      %1607 = vmatprep.mubr.bf16.mxu0 0
      %1608 = vmatmul.mubr.bf16.gmra.mrb[0].mxu0 %v1381
      %v1609 = vpop.f32.mrb[0].mxu0
      %v1610 = vadd.f32 %v1405, %v1609
      %v1611 = vpop.f32.mrb[0].mxu0
      %v1612 = vpop.f32.mrb[0].mxu0
      %v1613 = vadd.f32 %v1405, %v1612
      %v1614 = vpop.f32.mrb[0].mxu0
      %1615 = vdwg.mxu0
      %v1616 = vmax.f32 %v1490, 0.0
      %v1617 = vmax.f32 %v1493, 0.0
      %v1618 = vmax.f32 %v1498, 0.0
      %v1619 = vmax.f32 %v1501, 0.0
      %v1620 = vmax.f32 %v1506, 0.0
      %v1621 = vmax.f32 %v1509, 0.0
      %v1622 = vmax.f32 %v1514, 0.0
      %v1623 = vmax.f32 %v1517, 0.0
      %v1624 = vmax.f32 %v1522, 0.0
      %v1625 = vmax.f32 %v1525, 0.0
      %v1626 = vmax.f32 %v1530, 0.0
      %v1627 = vmax.f32 %v1533, 0.0
      %v1628 = vmax.f32 %v1538, 0.0
      %v1629 = vmax.f32 %v1541, 0.0
      %v1630 = vmax.f32 %v1546, 0.0
      %v1631 = vmax.f32 %v1549, 0.0
      %v1632 = vmax.f32 %v1554, 0.0
      %v1633 = vmax.f32 %v1557, 0.0
      %v1634 = vmax.f32 %v1562, 0.0
      %v1635 = vmax.f32 %v1565, 0.0
      %v1636 = vmax.f32 %v1570, 0.0
      %v1637 = vmax.f32 %v1573, 0.0
      %v1638 = vmax.f32 %v1578, 0.0
      %v1639 = vmax.f32 %v1581, 0.0
      %v1640 = vmax.f32 %v1586, 0.0
      %v1641 = vmax.f32 %v1589, 0.0
      %v1642 = vmax.f32 %v1594, 0.0
      %v1643 = vmax.f32 %v1597, 0.0
      %v1644 = vmax.f32 %v1602, 0.0
      %v1645 = vmax.f32 %v1605, 0.0
      %v1646 = vmax.f32 %v1610, 0.0
      %v1647 = vmax.f32 %v1613, 0.0
      %v1648 = vpack.c.bf16 %v1617, %v1616
      %v1649 = vpack.c.bf16 %v1619, %v1618
      %v1650 = vpack.c.bf16 %v1621, %v1620
      %v1651 = vpack.c.bf16 %v1623, %v1622
      %v1652 = vpack.c.bf16 %v1625, %v1624
      %v1653 = vpack.c.bf16 %v1627, %v1626
      %v1654 = vpack.c.bf16 %v1629, %v1628
      %v1655 = vpack.c.bf16 %v1631, %v1630
      %v1656 = vpack.c.bf16 %v1633, %v1632
      %v1657 = vpack.c.bf16 %v1635, %v1634
      %v1658 = vpack.c.bf16 %v1637, %v1636
      %v1659 = vpack.c.bf16 %v1639, %v1638
      %v1660 = vpack.c.bf16 %v1641, %v1640
      %v1661 = vpack.c.bf16 %v1643, %v1642
      %v1662 = vpack.c.bf16 %v1645, %v1644
      %v1663 = vpack.c.bf16 %v1647, %v1646
      %s1664 = scalar_lea.vmem %s1, 320
      %v1665 = vld [vmem:[%s1664] sm:$0xf]
      %v1666 = vld [vmem:[%s1664 + $0x4] sm:$0xf]
      %v1667 = vld [vmem:[%s1664 + $0x8] sm:$0xf]
      %v1668 = vld [vmem:[%s1664 + $0xc] sm:$0xf]
      %v1669 = vld [vmem:[%s1664 + $0x10] sm:$0xf]
      %v1670 = vld [vmem:[%s1664 + $0x14] sm:$0xf]
      %v1671 = vld [vmem:[%s1664 + $0x18] sm:$0xf]
      %v1672 = vld [vmem:[%s1664 + $0x1c] sm:$0xf]
      %v1673 = vld [vmem:[%s1664 + $0x20] sm:$0xf]
      %v1674 = vld [vmem:[%s1664 + $0x24] sm:$0xf]
      %v1675 = vld [vmem:[%s1664 + $0x28] sm:$0xf]
      %v1676 = vld [vmem:[%s1664 + $0x2c] sm:$0xf]
      %v1677 = vld [vmem:[%s1664 + $0x30] sm:$0xf]
      %v1678 = vld [vmem:[%s1664 + $0x34] sm:$0xf]
      %v1679 = vld [vmem:[%s1664 + $0x38] sm:$0xf]
      %v1680 = vld [vmem:[%s1664 + $0x3c] sm:$0xf]
      %s1681 = scalar_lea.vmem %s2, 5
      %v1682 = vld [vmem:[%s1681] sm:$0x1]
      %v1684 = vlaneseq
      %v1685 = vshrl.u32 %v1684, 7
      %v1686 = vsub.s32 0, %v1685
      %v1687 = vrot.slane %v1682, %v1686
      %v1705 = vunpack.c.l.b16 %v1665
      %v1706 = vunpack.c.l.b16 %v1666
      %v1707 = vunpack.c.l.b16 %v1667
      %v1708 = vunpack.c.l.b16 %v1668
      %v1709 = vunpack.c.l.b16 %v1669
      %v1710 = vunpack.c.l.b16 %v1670
      %v1711 = vunpack.c.l.b16 %v1671
      %v1712 = vunpack.c.l.b16 %v1672
      %v1713 = vunpack.c.l.b16 %v1673
      %v1714 = vunpack.c.l.b16 %v1674
      %v1715 = vunpack.c.l.b16 %v1675
      %v1716 = vunpack.c.l.b16 %v1676
      %v1717 = vunpack.c.l.b16 %v1677
      %v1718 = vunpack.c.l.b16 %v1678
      %v1719 = vunpack.c.l.b16 %v1679
      %v1720 = vunpack.c.l.b16 %v1680
      %v1721 = vpack.c.b16 %v1706, %v1705
      %v1722 = vpack.c.b16 %v1708, %v1707
      %v1723 = vpack.c.b16 %v1710, %v1709
      %v1724 = vpack.c.b16 %v1712, %v1711
      %v1725 = vpack.c.b16 %v1714, %v1713
      %v1726 = vpack.c.b16 %v1716, %v1715
      %v1727 = vpack.c.b16 %v1718, %v1717
      %v1728 = vpack.c.b16 %v1720, %v1719
      %1737 = vmatprep.subr.bf16.mxu0 0
      %1738 = vmatpush1.bf16.msra.mxu0 %v1721
      %1739 = vmatprep.subr.bf16.mxu0 0
      %1740 = vmatpush1.bf16.msra.mxu0 %v1722
      %1741 = vmatprep.subr.bf16.mxu0 0
      %1742 = vmatpush1.bf16.msra.mxu0 %v1723
      %1743 = vmatprep.subr.bf16.mxu0 0
      %1744 = vmatpush1.bf16.msra.mxu0 %v1724
      %1745 = vmatprep.subr.bf16.mxu0 0
      %1746 = vmatpush1.bf16.msra.mxu0 %v1725
      %1747 = vmatprep.subr.bf16.mxu0 0
      %1748 = vmatpush1.bf16.msra.mxu0 %v1726
      %1749 = vmatprep.subr.bf16.mxu0 0
      %1750 = vmatpush1.bf16.msra.mxu0 %v1727
      %1751 = vmatprep.subr.bf16.mxu0 0
      %1752 = vmatpush1.bf16.msra.mxu0 %v1728
      %1753 = vmatprep.subr.bf16.mxu0 0
      %1754 = vmatpush1.bf16.msra.mxu0 0
      %1755 = vmatprep.subr.bf16.mxu0 0
      %1756 = vmatpush1.bf16.msra.mxu0 0
      %1757 = vmatprep.subr.bf16.mxu0 0
      %1758 = vmatpush1.bf16.msra.mxu0 0
      %1759 = vmatprep.subr.bf16.mxu0 0
      %1760 = vmatpush1.bf16.msra.mxu0 0
      %1761 = vmatprep.subr.bf16.mxu0 0
      %1762 = vmatpush1.bf16.msra.mxu0 0
      %1763 = vmatprep.subr.bf16.mxu0 0
      %1764 = vmatpush1.bf16.msra.mxu0 0
      %1765 = vmatprep.subr.bf16.mxu0 0
      %1766 = vmatpush1.bf16.msra.mxu0 0
      %1767 = vmatprep.subr.bf16.mxu0 0
      %1768 = vmatpush1.bf16.msra.mxu0 0
      %1769 = vmatprep.mubr.bf16.mxu0 0
      %1770 = vmatmul.mubr.bf16.gmra.mrb[0].mxu0 %v1648
      %v1771 = vpop.f32.mrb[0].mxu0
      %v1772 = vadd.f32 %v1687, %v1771
      %v1773 = vpop.f32.mrb[0].mxu0
      %v1774 = vpop.f32.mrb[0].mxu0
      %v1775 = vadd.f32 %v1687, %v1774
      %v1776 = vpop.f32.mrb[0].mxu0
      %1777 = vmatprep.mubr.bf16.mxu0 0
      %1778 = vmatmul.mubr.bf16.gmra.mrb[0].mxu0 %v1649
      %v1779 = vpop.f32.mrb[0].mxu0
      %v1780 = vadd.f32 %v1687, %v1779
      %v1781 = vpop.f32.mrb[0].mxu0
      %v1782 = vpop.f32.mrb[0].mxu0
      %v1783 = vadd.f32 %v1687, %v1782
      %v1784 = vpop.f32.mrb[0].mxu0
      %1785 = vmatprep.mubr.bf16.mxu0 0
      %1786 = vmatmul.mubr.bf16.gmra.mrb[0].mxu0 %v1650
      %v1787 = vpop.f32.mrb[0].mxu0
      %v1788 = vadd.f32 %v1687, %v1787
      %v1789 = vpop.f32.mrb[0].mxu0
      %v1790 = vpop.f32.mrb[0].mxu0
      %v1791 = vadd.f32 %v1687, %v1790
      %v1792 = vpop.f32.mrb[0].mxu0
      %1793 = vmatprep.mubr.bf16.mxu0 0
      %1794 = vmatmul.mubr.bf16.gmra.mrb[0].mxu0 %v1651
      %v1795 = vpop.f32.mrb[0].mxu0
      %v1796 = vadd.f32 %v1687, %v1795
      %v1797 = vpop.f32.mrb[0].mxu0
      %v1798 = vpop.f32.mrb[0].mxu0
      %v1799 = vadd.f32 %v1687, %v1798
      %v1800 = vpop.f32.mrb[0].mxu0
      %1801 = vmatprep.mubr.bf16.mxu0 0
      %1802 = vmatmul.mubr.bf16.gmra.mrb[0].mxu0 %v1652
      %v1803 = vpop.f32.mrb[0].mxu0
      %v1804 = vadd.f32 %v1687, %v1803
      %v1805 = vpop.f32.mrb[0].mxu0
      %v1806 = vpop.f32.mrb[0].mxu0
      %v1807 = vadd.f32 %v1687, %v1806
      %v1808 = vpop.f32.mrb[0].mxu0
      %1809 = vmatprep.mubr.bf16.mxu0 0
      %1810 = vmatmul.mubr.bf16.gmra.mrb[0].mxu0 %v1653
      %v1811 = vpop.f32.mrb[0].mxu0
      %v1812 = vadd.f32 %v1687, %v1811
      %v1813 = vpop.f32.mrb[0].mxu0
      %v1814 = vpop.f32.mrb[0].mxu0
      %v1815 = vadd.f32 %v1687, %v1814
      %v1816 = vpop.f32.mrb[0].mxu0
      %1817 = vmatprep.mubr.bf16.mxu0 0
      %1818 = vmatmul.mubr.bf16.gmra.mrb[0].mxu0 %v1654
      %v1819 = vpop.f32.mrb[0].mxu0
      %v1820 = vadd.f32 %v1687, %v1819
      %v1821 = vpop.f32.mrb[0].mxu0
      %v1822 = vpop.f32.mrb[0].mxu0
      %v1823 = vadd.f32 %v1687, %v1822
      %v1824 = vpop.f32.mrb[0].mxu0
      %1825 = vmatprep.mubr.bf16.mxu0 0
      %1826 = vmatmul.mubr.bf16.gmra.mrb[0].mxu0 %v1655
      %v1827 = vpop.f32.mrb[0].mxu0
      %v1828 = vadd.f32 %v1687, %v1827
      %v1829 = vpop.f32.mrb[0].mxu0
      %v1830 = vpop.f32.mrb[0].mxu0
      %v1831 = vadd.f32 %v1687, %v1830
      %v1832 = vpop.f32.mrb[0].mxu0
      %1833 = vmatprep.mubr.bf16.mxu0 0
      %1834 = vmatmul.mubr.bf16.gmra.mrb[0].mxu0 %v1656
      %v1835 = vpop.f32.mrb[0].mxu0
      %v1836 = vadd.f32 %v1687, %v1835
      %v1837 = vpop.f32.mrb[0].mxu0
      %v1838 = vpop.f32.mrb[0].mxu0
      %v1839 = vadd.f32 %v1687, %v1838
      %v1840 = vpop.f32.mrb[0].mxu0
      %1841 = vmatprep.mubr.bf16.mxu0 0
      %1842 = vmatmul.mubr.bf16.gmra.mrb[0].mxu0 %v1657
      %v1843 = vpop.f32.mrb[0].mxu0
      %v1844 = vadd.f32 %v1687, %v1843
      %v1845 = vpop.f32.mrb[0].mxu0
      %v1846 = vpop.f32.mrb[0].mxu0
      %v1847 = vadd.f32 %v1687, %v1846
      %v1848 = vpop.f32.mrb[0].mxu0
      %1849 = vmatprep.mubr.bf16.mxu0 0
      %1850 = vmatmul.mubr.bf16.gmra.mrb[0].mxu0 %v1658
      %v1851 = vpop.f32.mrb[0].mxu0
      %v1852 = vadd.f32 %v1687, %v1851
      %v1853 = vpop.f32.mrb[0].mxu0
      %v1854 = vpop.f32.mrb[0].mxu0
      %v1855 = vadd.f32 %v1687, %v1854
      %v1856 = vpop.f32.mrb[0].mxu0
      %1857 = vmatprep.mubr.bf16.mxu0 0
      %1858 = vmatmul.mubr.bf16.gmra.mrb[0].mxu0 %v1659
      %v1859 = vpop.f32.mrb[0].mxu0
      %v1860 = vadd.f32 %v1687, %v1859
      %v1861 = vpop.f32.mrb[0].mxu0
      %v1862 = vpop.f32.mrb[0].mxu0
      %v1863 = vadd.f32 %v1687, %v1862
      %v1864 = vpop.f32.mrb[0].mxu0
      %1865 = vmatprep.mubr.bf16.mxu0 0
      %1866 = vmatmul.mubr.bf16.gmra.mrb[0].mxu0 %v1660
      %v1867 = vpop.f32.mrb[0].mxu0
      %v1868 = vadd.f32 %v1687, %v1867
      %v1869 = vpop.f32.mrb[0].mxu0
      %v1870 = vpop.f32.mrb[0].mxu0
      %v1871 = vadd.f32 %v1687, %v1870
      %v1872 = vpop.f32.mrb[0].mxu0
      %1873 = vmatprep.mubr.bf16.mxu0 0
      %1874 = vmatmul.mubr.bf16.gmra.mrb[0].mxu0 %v1661
      %v1875 = vpop.f32.mrb[0].mxu0
      %v1876 = vadd.f32 %v1687, %v1875
      %v1877 = vpop.f32.mrb[0].mxu0
      %v1878 = vpop.f32.mrb[0].mxu0
      %v1879 = vadd.f32 %v1687, %v1878
      %v1880 = vpop.f32.mrb[0].mxu0
      %1881 = vmatprep.mubr.bf16.mxu0 0
      %1882 = vmatmul.mubr.bf16.gmra.mrb[0].mxu0 %v1662
      %v1883 = vpop.f32.mrb[0].mxu0
      %v1884 = vadd.f32 %v1687, %v1883
      %v1885 = vpop.f32.mrb[0].mxu0
      %v1886 = vpop.f32.mrb[0].mxu0
      %v1887 = vadd.f32 %v1687, %v1886
      %v1888 = vpop.f32.mrb[0].mxu0
      %1889 = vmatprep.mubr.bf16.mxu0 0
      %1890 = vmatmul.mubr.bf16.gmra.mrb[0].mxu0 %v1663
      %v1891 = vpop.f32.mrb[0].mxu0
      %v1892 = vadd.f32 %v1687, %v1891
      %v1893 = vpop.f32.mrb[0].mxu0
      %v1894 = vpop.f32.mrb[0].mxu0
      %v1895 = vadd.f32 %v1687, %v1894
      %v1896 = vpop.f32.mrb[0].mxu0
      %1897 = vdwg.mxu0
      %1898 = vrot.lane.b32.xlu0 %v1772, 16
      %v1899 = vpop.permute.xlu0 %1898
      %1900 = vrot.lane.b32.xlu0 %v1775, 16
      %v1901 = vpop.permute.xlu0 %1900
      %1902 = vrot.lane.b32.xlu0 %v1780, 16
      %v1903 = vpop.permute.xlu0 %1902
      %1904 = vrot.lane.b32.xlu0 %v1783, 16
      %v1905 = vpop.permute.xlu0 %1904
      %1906 = vrot.lane.b32.xlu0 %v1788, 16
      %v1907 = vpop.permute.xlu0 %1906
      %1908 = vrot.lane.b32.xlu0 %v1791, 16
      %v1909 = vpop.permute.xlu0 %1908
      %1910 = vrot.lane.b32.xlu0 %v1796, 16
      %v1911 = vpop.permute.xlu0 %1910
      %1912 = vrot.lane.b32.xlu0 %v1799, 16
      %v1913 = vpop.permute.xlu0 %1912
      %1914 = vrot.lane.b32.xlu0 %v1804, 16
      %v1915 = vpop.permute.xlu0 %1914
      %1916 = vrot.lane.b32.xlu0 %v1807, 16
      %v1917 = vpop.permute.xlu0 %1916
      %1918 = vrot.lane.b32.xlu0 %v1812, 16
      %v1919 = vpop.permute.xlu0 %1918
      %1920 = vrot.lane.b32.xlu0 %v1815, 16
      %v1921 = vpop.permute.xlu0 %1920
      %1922 = vrot.lane.b32.xlu0 %v1820, 16
      %v1923 = vpop.permute.xlu0 %1922
      %1924 = vrot.lane.b32.xlu0 %v1823, 16
      %v1925 = vpop.permute.xlu0 %1924
      %1926 = vrot.lane.b32.xlu0 %v1828, 16
      %v1927 = vpop.permute.xlu0 %1926
      %1928 = vrot.lane.b32.xlu0 %v1831, 16
      %v1929 = vpop.permute.xlu0 %1928
      %1930 = vrot.lane.b32.xlu0 %v1836, 16
      %v1931 = vpop.permute.xlu0 %1930
      %1932 = vrot.lane.b32.xlu0 %v1839, 16
      %v1933 = vpop.permute.xlu0 %1932
      %1934 = vrot.lane.b32.xlu0 %v1844, 16
      %v1935 = vpop.permute.xlu0 %1934
      %1936 = vrot.lane.b32.xlu0 %v1847, 16
      %v1937 = vpop.permute.xlu0 %1936
      %1938 = vrot.lane.b32.xlu0 %v1852, 16
      %v1939 = vpop.permute.xlu0 %1938
      %1940 = vrot.lane.b32.xlu0 %v1855, 16
      %v1941 = vpop.permute.xlu0 %1940
      %1942 = vrot.lane.b32.xlu0 %v1860, 16
      %v1943 = vpop.permute.xlu0 %1942
      %1944 = vrot.lane.b32.xlu0 %v1863, 16
      %v1945 = vpop.permute.xlu0 %1944
      %1946 = vrot.lane.b32.xlu0 %v1868, 16
      %v1947 = vpop.permute.xlu0 %1946
      %1948 = vrot.lane.b32.xlu0 %v1871, 16
      %v1949 = vpop.permute.xlu0 %1948
      %1950 = vrot.lane.b32.xlu0 %v1876, 16
      %v1951 = vpop.permute.xlu0 %1950
      %1952 = vrot.lane.b32.xlu0 %v1879, 16
      %v1953 = vpop.permute.xlu0 %1952
      %1954 = vrot.lane.b32.xlu0 %v1884, 16
      %v1955 = vpop.permute.xlu0 %1954
      %1956 = vrot.lane.b32.xlu0 %v1887, 16
      %v1957 = vpop.permute.xlu0 %1956
      %1958 = vrot.lane.b32.xlu0 %v1892, 16
      %v1959 = vpop.permute.xlu0 %1958
      %1960 = vrot.lane.b32.xlu0 %v1895, 16
      %v1961 = vpop.permute.xlu0 %1960
      %v1962 = vadd.f32 %v1052, %v1899
      %v1963 = vadd.f32 %v1053, %v1901
      %v1964 = vadd.f32 %v1054, %v1903
      %v1965 = vadd.f32 %v1055, %v1905
      %v1966 = vadd.f32 %v1056, %v1907
      %v1967 = vadd.f32 %v1057, %v1909
      %v1968 = vadd.f32 %v1058, %v1911
      %v1969 = vadd.f32 %v1059, %v1913
      %v1970 = vadd.f32 %v1060, %v1915
      %v1971 = vadd.f32 %v1061, %v1917
      %v1972 = vadd.f32 %v1062, %v1919
      %v1973 = vadd.f32 %v1063, %v1921
      %v1974 = vadd.f32 %v1064, %v1923
      %v1975 = vadd.f32 %v1065, %v1925
      %v1976 = vadd.f32 %v1066, %v1927
      %v1977 = vadd.f32 %v1067, %v1929
      %v1978 = vadd.f32 %v1068, %v1931
      %v1979 = vadd.f32 %v1069, %v1933
      %v1980 = vadd.f32 %v1070, %v1935
      %v1981 = vadd.f32 %v1071, %v1937
      %v1982 = vadd.f32 %v1072, %v1939
      %v1983 = vadd.f32 %v1073, %v1941
      %v1984 = vadd.f32 %v1074, %v1943
      %v1985 = vadd.f32 %v1075, %v1945
      %v1986 = vadd.f32 %v1076, %v1947
      %v1987 = vadd.f32 %v1077, %v1949
      %v1988 = vadd.f32 %v1078, %v1951
      %v1989 = vadd.f32 %v1079, %v1953
      %v1990 = vadd.f32 %v1080, %v1955
      %v1991 = vadd.f32 %v1081, %v1957
      %v1992 = vadd.f32 %v1082, %v1959
      %v1993 = vadd.f32 %v1083, %v1961
      %1994 = vst [vmem:[%s172] sm:$0xff] %v1962
      %1995 = vst [vmem:[%s172 + $0x8] sm:$0xff] %v1963
      %1996 = vst [vmem:[%s172 + $0x10] sm:$0xff] %v1964
      %1997 = vst [vmem:[%s172 + $0x18] sm:$0xff] %v1965
      %1998 = vst [vmem:[%s172 + $0x20] sm:$0xff] %v1966
      %1999 = vst [vmem:[%s172 + $0x28] sm:$0xff] %v1967
      %2000 = vst [vmem:[%s172 + $0x30] sm:$0xff] %v1968
      %2001 = vst [vmem:[%s172 + $0x38] sm:$0xff] %v1969
      %2002 = vst [vmem:[%s172 + $0x40] sm:$0xff] %v1970
      %2003 = vst [vmem:[%s172 + $0x48] sm:$0xff] %v1971
      %2004 = vst [vmem:[%s172 + $0x50] sm:$0xff] %v1972
      %2005 = vst [vmem:[%s172 + $0x58] sm:$0xff] %v1973
      %2006 = vst [vmem:[%s172 + $0x60] sm:$0xff] %v1974
      %2007 = vst [vmem:[%s172 + $0x68] sm:$0xff] %v1975
      %2008 = vst [vmem:[%s172 + $0x70] sm:$0xff] %v1976
      %2009 = vst [vmem:[%s172 + $0x78] sm:$0xff] %v1977
      %2010 = vst [vmem:[%s172 + $0x80] sm:$0xff] %v1978
      %2011 = vst [vmem:[%s172 + $0x88] sm:$0xff] %v1979
      %2012 = vst [vmem:[%s172 + $0x90] sm:$0xff] %v1980
      %2013 = vst [vmem:[%s172 + $0x98] sm:$0xff] %v1981
      %2014 = vst [vmem:[%s172 + $0xa0] sm:$0xff] %v1982
      %2015 = vst [vmem:[%s172 + $0xa8] sm:$0xff] %v1983
      %2016 = vst [vmem:[%s172 + $0xb0] sm:$0xff] %v1984
      %2017 = vst [vmem:[%s172 + $0xb8] sm:$0xff] %v1985
      %2018 = vst [vmem:[%s172 + $0xc0] sm:$0xff] %v1986
      %2019 = vst [vmem:[%s172 + $0xc8] sm:$0xff] %v1987
      %2020 = vst [vmem:[%s172 + $0xd0] sm:$0xff] %v1988
      %2021 = vst [vmem:[%s172 + $0xd8] sm:$0xff] %v1989
      %2022 = vst [vmem:[%s172 + $0xe0] sm:$0xff] %v1990
      %2023 = vst [vmem:[%s172 + $0xe8] sm:$0xff] %v1991
      %2024 = vst [vmem:[%s172 + $0xf0] sm:$0xff] %v1992
      %2025 = vst [vmem:[%s172 + $0xf8] sm:$0xff] %v1993
      %s2026 = smul.u32 32, %s14
      %p2027 = scmp.lt.s32.totalorder %s2026, 63
      %s2028 = scalar_select %p2027, %s2026, 63
      %s2029 = smul.addr %s2028, 8
      %s2030 = scalar_lea.vmem %s3, %s2029
      // Predicated region
      $region33: #{mlp_sca_forward.1} parent=31 // pred_check
        %p2031 = pneg %p100
      $region34: #{mlp_sca_forward.1} parent=31 // pred_check_branch
        %2033 = sbr.rel (%p2031) target = $region36
      $region35: #{mlp_sca_forward.1} parent=31 // pred_region
        %s2034 = smul.u32 32, %s14
      $region36: #{mlp_sca_forward.1} parent=31 // pred_fallthru
        _
    $region32: #{mlp_sca_forward.1} parent=5 // pred_fallthru
      _
    %p2035 = scmp.le.s32.totalorder 2, %s9
    // Predicated region
    $region37: #{mlp_sca_forward.1} parent=5 // pred_check
      %p2036 = pneg %p2035
    $region38: #{mlp_sca_forward.1} parent=5 // pred_check_branch
      %2038 = sbr.rel (%p2036) target = $region40
    $region39: #{mlp_sca_forward.1} parent=5 // pred_region
      %s2039 = ssub.s32 %s9, 2
      // Predicated region
      $region41: #{mlp_sca_forward.1} parent=39 // pred_check
        %p2040 = pneg %p106
      $region42: #{mlp_sca_forward.1} parent=39 // pred_check_branch
        %2042 = sbr.rel (%p2040) target = $region44
      $region43: #{mlp_sca_forward.1} parent=39 // pred_region
        %s2043 = smul.u32 32, %s15
        %p2044 = scmp.lt.s32.totalorder %s2043, 63
        %s2045 = scalar_select %p2044, %s2043, 63
        %s2046 = smul.addr %s2045, 8
        %s2047 = scalar_lea.vmem %s3, %s2046
      $region44: #{mlp_sca_forward.1} parent=39 // pred_fallthru
        _
    $region40: #{mlp_sca_forward.1} parent=5 // pred_fallthru
      _
  $region6: #{mlp_sca_forward.1} parent=0 // loop_footer
    %s13 = sadd.s32 1, %s9
  $region7: #{mlp_sca_forward.1} parent=0 // loop_footer_branch
    %8 = sbr.rel target = $region3
  $region8: #{mlp_sca_forward.1} parent=0 // loop_exit
    _

</llo_original>
